<compile_context>
chip_gen: v7x
topology: tpu7x:2x2x1
jax: 0.10.0
libtpu: 0.0.40
codegen_flags: <defaults>
</compile_context>

<pallas_src>
import jax
import jax.numpy as jnp
import numpy as np
from jax.experimental import pallas as pl
from jax.experimental.pallas import tpu as pltpu

N_NODES = 64
N_EDGES = 256
IN_DIM = 32
OUT_DIM = 32          # == IN_DIM so residual path is active (as in the module)
BN_EPS = 1e-5
AGG_EPS = 1e-6


def gatedgcn_kernel(h_ref, e_ref, src_oh_ref, dst_oh_ref, dst_oh_t_ref,
                    w_node_ref, b_node_ref, wc_ref, bc_ref,
                    aff_h_ref, aff_e_ref,
                    h_out_ref, e_out_ref):
    f32 = jnp.float32

    h_in = h_ref[...]                           # [N, D]
    e_in = e_ref[...]                           # [E, D]
    D = h_in.shape[1]

    # 0/1 incidence is exact in bf16; widen to f32 so value math stays f32 on the MXU.
    src_oh = src_oh_ref[...].astype(f32)        # [E, N]
    dst_oh = dst_oh_ref[...].astype(f32)        # [E, N]
    dst_oh_t = dst_oh_t_ref[...].astype(f32)    # [N, E] (pre-transposed in wrapper)

    # One fused lane-dense node projection; columns ordered [Bh | Dh | Eh | Ah].
    proj = (jnp.dot(h_in, w_node_ref[...], preferred_element_type=f32)
            + b_node_ref[...])                  # [N, 4D]
    BDh = proj[:, 0:2 * D]                      # [N, 2D]  (Bh | Dh)
    Eh = proj[:, 2 * D:3 * D]                   # [N, D]
    Ah = proj[:, 3 * D:4 * D]                   # [N, D]

    Ce = (jnp.dot(e_in, wc_ref[...], preferred_element_type=f32)
          + bc_ref[...])                        # [E, D]

    # message_func gathers: one-hot matmul == row gather (fused B/D for src).
    BDh_src = jnp.dot(src_oh, BDh, preferred_element_type=f32)   # [E, 2D]
    Eh_dst = jnp.dot(dst_oh, Eh, preferred_element_type=f32)     # [E, D]
    Bh_src = BDh_src[:, 0:D]
    Dh_src = BDh_src[:, D:2 * D]

    e_new = Ce + Dh_src + Eh_dst                # edges.data['e']
    sigma = jax.nn.sigmoid(e_new)

    # reduce_func: fused scatter-sum over destination nodes (single MXU pass,
    # pre-transposed incidence -> no in-kernel transpose).
    msg = jnp.concatenate([sigma * Bh_src, sigma], axis=1)       # [E, 2D]
    agg = jnp.dot(dst_oh_t, msg, preferred_element_type=f32)     # [N, 2D]
    num = agg[:, 0:D]
    den = agg[:, D:2 * D]

    h_new = Ah + num * pl.reciprocal(den + AGG_EPS, approx=False)

    # graph_norm + eval BatchNorm pre-folded into per-channel scale/shift, then relu.
    h_new = jnp.maximum(h_new * aff_h_ref[0:1, :] + aff_h_ref[1:2, :], 0.0)
    e_act = jnp.maximum(e_new * aff_e_ref[0:1, :] + aff_e_ref[1:2, :], 0.0)

    # residual (in_dim == out_dim); dropout is identity in eval mode.
    h_out_ref[...] = h_in + h_new
    e_out_ref[...] = e_in + e_act


def gatedgcn_forward(h, e, src_oh, dst_oh, params):
    n_nodes = h.shape[0]
    n_edges = e.shape[0]
    norm_n = 1.0 / float(np.sqrt(n_nodes))
    norm_e = 1.0 / float(np.sqrt(n_edges))

    # --- wrapper-side parameter / layout plumbing (cheap one-off XLA ops) ---
    # Fused node projection, columns ordered [B | D | E | A].
    w_node = jnp.concatenate(
        [params["WB"], params["WD"], params["WE"], params["WA"]], axis=1)   # [Din, 4*Dout]
    b_node = jnp.concatenate(
        [params["bB"], params["bD"], params["bE"], params["bA"]])[None, :]  # [1, 4*Dout]
    wc = params["WC"]
    bc = params["bC"][None, :]                                              # [1, Dout]

    def fold_affine(bn, norm):
        gamma, beta, mean, var = bn[0], bn[1], bn[2], bn[3]
        inv = gamma * jax.lax.rsqrt(var + BN_EPS)
        scale = norm * inv
        shift = beta - mean * inv
        return jnp.stack([scale, shift], axis=0)                            # [2, Dout]

    aff_h = fold_affine(params["bn_h"], norm_n)
    aff_e = fold_affine(params["bn_e"], norm_e)

    dst_oh_t = dst_oh.T                                                     # [N, E], bf16

    def vmem():
        return pl.BlockSpec(memory_space=pltpu.MemorySpace.VMEM)

    # TODO(synk): for large graphs (E*N incidence exceeding VMEM, esp. v7x's 64 MiB)
    # add an edge-tile grid with an "arbitrary" reduction axis accumulating num/den in
    # VMEM scratch (or scalar-prefetched index gathers); at these shapes everything
    # fits comfortably in a single gridless invocation.
    return pl.pallas_call(
        gatedgcn_kernel,
        out_shape=(
            jax.ShapeDtypeStruct((n_nodes, OUT_DIM), jnp.float32),
            jax.ShapeDtypeStruct((n_edges, OUT_DIM), jnp.float32),
        ),
        in_specs=[vmem() for _ in range(11)],
        out_specs=(vmem(), vmem()),
    )(h, e, src_oh, dst_oh, dst_oh_t,
      w_node, b_node, wc, bc, aff_h, aff_e)


def reference_forward(h, e, src, dst, params):
    """Pure-JAX reference (gather + segment_sum formulation)."""
    n_nodes = h.shape[0]
    n_edges = e.shape[0]

    def lin(x, w, b):
        return x @ params[w] + params[b]

    Ah = lin(h, "WA", "bA")
    Bh = lin(h, "WB", "bB")
    Ce = lin(e, "WC", "bC")
    Dh = lin(h, "WD", "bD")
    Eh = lin(h, "WE", "bE")

    e_new = Ce + Dh[src] + Eh[dst]
    sigma = jax.nn.sigmoid(e_new)
    num = jax.ops.segment_sum(sigma * Bh[src], dst, num_segments=n_nodes)
    den = jax.ops.segment_sum(sigma, dst, num_segments=n_nodes)
    h_new = Ah + num / (den + AGG_EPS)

    h_new = h_new * (1.0 / np.sqrt(n_nodes))
    e_new = e_new * (1.0 / np.sqrt(n_edges))

    def bn(x, p):
        gamma, beta, mean, var = p[0], p[1], p[2], p[3]
        return (x - mean) * jax.lax.rsqrt(var + BN_EPS) * gamma + beta

    h_new = jnp.maximum(bn(h_new, params["bn_h"]), 0.0)
    e_new = jnp.maximum(bn(e_new, params["bn_e"]), 0.0)
    return h + h_new, e + e_new


def make_params(key):
    ks = jax.random.split(key, 16)
    bound = 1.0 / np.sqrt(IN_DIM)   # PyTorch nn.Linear default init

    def linw(k):
        # stored pre-transposed: [Din, Dout]
        return jax.random.uniform(k, (IN_DIM, OUT_DIM), jnp.float32, -bound, bound)

    def linb(k):
        return jax.random.uniform(k, (OUT_DIM,), jnp.float32, -bound, bound)

    def bn_params(k):
        k1, k2, k3, k4 = jax.random.split(k, 4)
        gamma = 1.0 + 0.1 * jax.random.normal(k1, (OUT_DIM,), jnp.float32)
        beta = 0.05 * jax.random.normal(k2, (OUT_DIM,), jnp.float32)
        mean = 0.1 * jax.random.normal(k3, (OUT_DIM,), jnp.float32)
        var = 1.0 + 0.2 * jax.random.uniform(k4, (OUT_DIM,), jnp.float32)
        return jnp.stack([gamma, beta, mean, var], axis=0)          # [4, Dout]

    return {
        "WA": linw(ks[0]), "WB": linw(ks[1]), "WC": linw(ks[2]),
        "WD": linw(ks[3]), "WE": linw(ks[4]),
        "bA": linb(ks[5]), "bB": linb(ks[6]), "bC": linb(ks[7]),
        "bD": linb(ks[8]), "bE": linb(ks[9]),
        "bn_h": bn_params(ks[10]),
        "bn_e": bn_params(ks[11]),
    }


if __name__ == "__main__":
    key = jax.random.PRNGKey(0)
    k_h, k_e, k_src, k_dst, k_p = jax.random.split(key, 5)

    h = jax.random.normal(k_h, (N_NODES, IN_DIM), jnp.float32)
    e = jax.random.normal(k_e, (N_EDGES, IN_DIM), jnp.float32)

    # Graph: ring edges guarantee every node has in-degree >= 1 (so the dense
    # aggregation matches DGL's reduce behaviour), plus deterministic random edges.
    ring_src = jnp.arange(N_NODES, dtype=jnp.int32)
    ring_dst = (ring_src + 1) % N_NODES
    extra = N_EDGES - N_NODES
    rand_src = jax.random.randint(k_src, (extra,), 0, N_NODES, jnp.int32)
    rand_dst = jax.random.randint(k_dst, (extra,), 0, N_NODES, jnp.int32)
    src = jnp.concatenate([ring_src, rand_src])
    dst = jnp.concatenate([ring_dst, rand_dst])

    # bf16 incidence matrices: 0/1 exact, half the DMA bytes of f32.
    src_oh = jax.nn.one_hot(src, N_NODES, dtype=jnp.bfloat16)   # [E, N]
    dst_oh = jax.nn.one_hot(dst, N_NODES, dtype=jnp.bfloat16)   # [E, N]

    params = make_params(k_p)

    h_out, e_out = gatedgcn_forward(h, e, src_oh, dst_oh, params)
    jax.block_until_ready((h_out, e_out))

    h_ref, e_ref = reference_forward(h, e, src, dst, params)
    np.testing.assert_allclose(np.asarray(h_out), np.asarray(h_ref), rtol=2e-4, atol=2e-4)
    np.testing.assert_allclose(np.asarray(e_out), np.asarray(e_ref), rtol=2e-4, atol=2e-4)

    print("KERNEL_OK")
</pallas_src>

<mosaic_0001>
module attributes {stable_mosaic.version = 11 : i64} {
  func.func @gatedgcn_kernel(%arg0: memref<64x32xf32, #tpu.memory_space<vmem>>, %arg1: memref<256x32xf32, #tpu.memory_space<vmem>>, %arg2: memref<256x64xbf16, #tpu.memory_space<vmem>>, %arg3: memref<256x64xbf16, #tpu.memory_space<vmem>>, %arg4: memref<64x256xbf16, #tpu.memory_space<vmem>>, %arg5: memref<32x128xf32, #tpu.memory_space<vmem>>, %arg6: memref<1x128xf32, #tpu.memory_space<vmem>>, %arg7: memref<32x32xf32, #tpu.memory_space<vmem>>, %arg8: memref<1x32xf32, #tpu.memory_space<vmem>>, %arg9: memref<2x32xf32, #tpu.memory_space<vmem>>, %arg10: memref<2x32xf32, #tpu.memory_space<vmem>>, %arg11: memref<64x32xf32, #tpu.memory_space<vmem>>, %arg12: memref<256x32xf32, #tpu.memory_space<vmem>>) attributes {dimension_semantics = [], scalar_prefetch = 0 : i64, scratch_operands = 0 : i64, tpu.core_type = #tpu.core_type<tc>} {
    %c0 = arith.constant 0 : index
    %c0_0 = arith.constant 0 : index
    %0 = vector.load %arg0[%c0, %c0_0] : memref<64x32xf32, #tpu.memory_space<vmem>>, vector<64x32xf32>
    %c0_1 = arith.constant 0 : index
    %c0_2 = arith.constant 0 : index
    %1 = vector.load %arg1[%c0_1, %c0_2] : memref<256x32xf32, #tpu.memory_space<vmem>>, vector<256x32xf32>
    %c0_3 = arith.constant 0 : index
    %c0_4 = arith.constant 0 : index
    %2 = vector.load %arg2[%c0_3, %c0_4] : memref<256x64xbf16, #tpu.memory_space<vmem>>, vector<256x64xbf16>
    %3 = arith.extf %2 : vector<256x64xbf16> to vector<256x64xf32>
    %c0_5 = arith.constant 0 : index
    %c0_6 = arith.constant 0 : index
    %4 = vector.load %arg3[%c0_5, %c0_6] : memref<256x64xbf16, #tpu.memory_space<vmem>>, vector<256x64xbf16>
    %5 = arith.extf %4 : vector<256x64xbf16> to vector<256x64xf32>
    %c0_7 = arith.constant 0 : index
    %c0_8 = arith.constant 0 : index
    %6 = vector.load %arg4[%c0_7, %c0_8] : memref<64x256xbf16, #tpu.memory_space<vmem>>, vector<64x256xbf16>
    %7 = arith.extf %6 : vector<64x256xbf16> to vector<64x256xf32>
    %c0_9 = arith.constant 0 : index
    %c0_10 = arith.constant 0 : index
    %8 = vector.load %arg5[%c0_9, %c0_10] : memref<32x128xf32, #tpu.memory_space<vmem>>, vector<32x128xf32>
    %cst = arith.constant dense<0.000000e+00> : vector<64x128xf32>
    %9 = tpu.matmul %0, %8, %cst {dimension_numbers = #tpu.dot_dimension_numbers<[1], [0], [0], [1], [0, 0, 1, 1], [], []>} : vector<64x32xf32>, vector<32x128xf32>, vector<64x128xf32> -> vector<64x128xf32>
    %c0_11 = arith.constant 0 : index
    %c0_12 = arith.constant 0 : index
    %10 = vector.load %arg6[%c0_11, %c0_12] : memref<1x128xf32, #tpu.memory_space<vmem>>, vector<1x128xf32>
    %11 = vector.broadcast %10 : vector<1x128xf32> to vector<64x128xf32>
    %12 = arith.addf %9, %11 : vector<64x128xf32>
    %13 = vector.extract_strided_slice %12 {offsets = [0, 0], sizes = [64, 64], strides = [1, 1]} : vector<64x128xf32> to vector<64x64xf32>
    %14 = vector.extract_strided_slice %12 {offsets = [0, 64], sizes = [64, 32], strides = [1, 1]} : vector<64x128xf32> to vector<64x32xf32>
    %15 = vector.extract_strided_slice %12 {offsets = [0, 96], sizes = [64, 32], strides = [1, 1]} : vector<64x128xf32> to vector<64x32xf32>
    %c0_13 = arith.constant 0 : index
    %c0_14 = arith.constant 0 : index
    %16 = vector.load %arg7[%c0_13, %c0_14] : memref<32x32xf32, #tpu.memory_space<vmem>>, vector<32x32xf32>
    %cst_15 = arith.constant dense<0.000000e+00> : vector<256x32xf32>
    %17 = tpu.matmul %1, %16, %cst_15 {dimension_numbers = #tpu.dot_dimension_numbers<[1], [0], [0], [1], [0, 0, 1, 1], [], []>} : vector<256x32xf32>, vector<32x32xf32>, vector<256x32xf32> -> vector<256x32xf32>
    %c0_16 = arith.constant 0 : index
    %c0_17 = arith.constant 0 : index
    %18 = vector.load %arg8[%c0_16, %c0_17] : memref<1x32xf32, #tpu.memory_space<vmem>>, vector<1x32xf32>
    %19 = vector.broadcast %18 : vector<1x32xf32> to vector<256x32xf32>
    %20 = arith.addf %17, %19 : vector<256x32xf32>
    %cst_18 = arith.constant dense<0.000000e+00> : vector<256x64xf32>
    %21 = tpu.matmul %3, %13, %cst_18 {dimension_numbers = #tpu.dot_dimension_numbers<[1], [0], [0], [1], [0, 0, 1, 1], [], []>} : vector<256x64xf32>, vector<64x64xf32>, vector<256x64xf32> -> vector<256x64xf32>
    %cst_19 = arith.constant dense<0.000000e+00> : vector<256x32xf32>
    %22 = tpu.matmul %5, %14, %cst_19 {dimension_numbers = #tpu.dot_dimension_numbers<[1], [0], [0], [1], [0, 0, 1, 1], [], []>} : vector<256x64xf32>, vector<64x32xf32>, vector<256x32xf32> -> vector<256x32xf32>
    %23 = vector.extract_strided_slice %21 {offsets = [0, 0], sizes = [256, 32], strides = [1, 1]} : vector<256x64xf32> to vector<256x32xf32>
    %24 = vector.extract_strided_slice %21 {offsets = [0, 32], sizes = [256, 32], strides = [1, 1]} : vector<256x64xf32> to vector<256x32xf32>
    %25 = arith.addf %20, %24 : vector<256x32xf32>
    %26 = arith.addf %25, %22 : vector<256x32xf32>
    %27 = arith.negf %26 : vector<256x32xf32>
    %28 = math.exp %27 : vector<256x32xf32>
    %cst_20 = arith.constant 1.000000e+00 : f32
    %29 = vector.broadcast %cst_20 : f32 to vector<256x32xf32>
    %30 = arith.addf %29, %28 : vector<256x32xf32>
    %31 = arith.divf %29, %30 : vector<256x32xf32>
    %32 = arith.mulf %31, %23 : vector<256x32xf32>
    %33 = tpu.concatenate %32, %31 in 1 : vector<256x32xf32>, vector<256x32xf32> -> vector<256x64xf32>
    %cst_21 = arith.constant dense<0.000000e+00> : vector<64x64xf32>
    %34 = tpu.matmul %7, %33, %cst_21 {dimension_numbers = #tpu.dot_dimension_numbers<[1], [0], [0], [1], [0, 0, 1, 1], [], []>} : vector<64x256xf32>, vector<256x64xf32>, vector<64x64xf32> -> vector<64x64xf32>
    %35 = vector.extract_strided_slice %34 {offsets = [0, 0], sizes = [64, 32], strides = [1, 1]} : vector<64x64xf32> to vector<64x32xf32>
    %36 = vector.extract_strided_slice %34 {offsets = [0, 32], sizes = [64, 32], strides = [1, 1]} : vector<64x64xf32> to vector<64x32xf32>
    %cst_22 = arith.constant 9.99999997E-7 : f32
    %37 = vector.broadcast %cst_22 : f32 to vector<64x32xf32>
    %38 = arith.addf %36, %37 : vector<64x32xf32>
    %39 = tpu.reciprocal %38 : vector<64x32xf32> -> vector<64x32xf32>
    %40 = arith.mulf %35, %39 : vector<64x32xf32>
    %41 = arith.addf %15, %40 : vector<64x32xf32>
    %c0_23 = arith.constant 0 : index
    %c0_24 = arith.constant 0 : index
    %42 = vector.load %arg9[%c0_23, %c0_24] : memref<2x32xf32, #tpu.memory_space<vmem>>, vector<1x32xf32>
    %43 = vector.broadcast %42 : vector<1x32xf32> to vector<64x32xf32>
    %44 = arith.mulf %41, %43 : vector<64x32xf32>
    %c1 = arith.constant 1 : index
    %c0_25 = arith.constant 0 : index
    %45 = vector.load %arg9[%c1, %c0_25] : memref<2x32xf32, #tpu.memory_space<vmem>>, vector<1x32xf32>
    %46 = vector.broadcast %45 : vector<1x32xf32> to vector<64x32xf32>
    %47 = arith.addf %44, %46 : vector<64x32xf32>
    %cst_26 = arith.constant 0.000000e+00 : f32
    %48 = vector.broadcast %cst_26 : f32 to vector<64x32xf32>
    %49 = arith.maximumf %47, %48 : vector<64x32xf32>
    %c0_27 = arith.constant 0 : index
    %c0_28 = arith.constant 0 : index
    %50 = vector.load %arg10[%c0_27, %c0_28] : memref<2x32xf32, #tpu.memory_space<vmem>>, vector<1x32xf32>
    %51 = vector.broadcast %50 : vector<1x32xf32> to vector<256x32xf32>
    %52 = arith.mulf %26, %51 : vector<256x32xf32>
    %c1_29 = arith.constant 1 : index
    %c0_30 = arith.constant 0 : index
    %53 = vector.load %arg10[%c1_29, %c0_30] : memref<2x32xf32, #tpu.memory_space<vmem>>, vector<1x32xf32>
    %54 = vector.broadcast %53 : vector<1x32xf32> to vector<256x32xf32>
    %55 = arith.addf %52, %54 : vector<256x32xf32>
    %cst_31 = arith.constant 0.000000e+00 : f32
    %56 = vector.broadcast %cst_31 : f32 to vector<256x32xf32>
    %57 = arith.maximumf %55, %56 : vector<256x32xf32>
    %58 = arith.addf %0, %49 : vector<64x32xf32>
    %c0_32 = arith.constant 0 : index
    %c0_33 = arith.constant 0 : index
    %59 = vector.load %arg11[%c0_32, %c0_33] : memref<64x32xf32, #tpu.memory_space<vmem>>, vector<64x32xf32>
    tpu.vector_store %arg11[%c0_32, %c0_33], %58 {strides = array<i32>} : memref<64x32xf32, #tpu.memory_space<vmem>>, vector<64x32xf32>,
    %60 = arith.addf %1, %57 : vector<256x32xf32>
    %c0_34 = arith.constant 0 : index
    %c0_35 = arith.constant 0 : index
    %61 = vector.load %arg12[%c0_34, %c0_35] : memref<256x32xf32, #tpu.memory_space<vmem>>, vector<256x32xf32>
    tpu.vector_store %arg12[%c0_34, %c0_35], %60 {strides = array<i32>} : memref<256x32xf32, #tpu.memory_space<vmem>>, vector<256x32xf32>,
    return
  }
}

</mosaic_0001>

<llo_original>
// kernel: tpu_custom_call.1
$region0: #{tpu_custom_call.1}
  #allocation0 [shape = 'u32[]', space=smem, size = 0x4, offset = 0x4, fixed_abs, tag = 'smem constant byte address 0x4 - core index']
  #allocation1 [shape = 'u32[144,128]{1,0:T(1,128)}', space=vmem, size = 0x12000, scoped, tag = 'internal scratch']
  %s0 = inlined_call_operand.vmem [shape: f32[64,32], index: 0, kind: input, shape index: {}]
  %s1 = inlined_call_operand.vmem [shape: f32[256,32], index: 1, kind: input, shape index: {}]
  %s2 = inlined_call_operand.vmem [shape: bf16[256,64], index: 2, kind: input, shape index: {}]
  %s3 = inlined_call_operand.vmem [shape: bf16[256,64], index: 3, kind: input, shape index: {}]
  %s4 = inlined_call_operand.vmem [shape: bf16[64,256], index: 4, kind: input, shape index: {}]
  %s5 = inlined_call_operand.vmem [shape: f32[32,128], index: 5, kind: input, shape index: {}]
  %s6 = inlined_call_operand.vmem [shape: f32[1,128], index: 6, kind: input, shape index: {}]
  %s7 = inlined_call_operand.vmem [shape: f32[32,32], index: 7, kind: input, shape index: {}]
  %s8 = inlined_call_operand.vmem [shape: f32[1,32], index: 8, kind: input, shape index: {}]
  %s9 = inlined_call_operand.vmem [shape: f32[2,32], index: 9, kind: input, shape index: {}]
  %s10 = inlined_call_operand.vmem [shape: f32[2,32], index: 10, kind: input, shape index: {}]
  %s11 = inlined_call_operand.vmem [shape: f32[64,32], index: 11, kind: output, shape index: {0}]
  %s12 = inlined_call_operand.vmem [shape: f32[256,32], index: 12, kind: output, shape index: {1}]
  %13 = xla_tuple %s11, %s12
  %s14 = sld [smem:[#allocation0]]
  $region62: #{tpu_custom_call.1} parent=0
    _
  %s16 = ssub.s32 1, %s14
  %s17 = scalar_select 0, %s16, %s14
  // Predicated region
  $region2: #{tpu_custom_call.1} parent=0 // pred_check
    _
  $region3: #{tpu_custom_call.1} parent=0 // pred_check_branch
    %19 = sbr.rel (0) target = $region5
  $region4: #{tpu_custom_call.1} parent=0 // pred_region
    _
  $region5: #{tpu_custom_call.1} parent=0 // pred_fallthru
    _
  // Predicated region
  $region6: #{tpu_custom_call.1} parent=0 // pred_check
    _
  $region7: #{tpu_custom_call.1} parent=0 // pred_check_branch
    %21 = sbr.rel (0) target = $region9
  $region8: #{tpu_custom_call.1} parent=0 // pred_region
    _
  $region9: #{tpu_custom_call.1} parent=0 // pred_fallthru
    _
  // Predicated region
  $region10: #{tpu_custom_call.1} parent=0 // pred_check
    _
  $region11: #{tpu_custom_call.1} parent=0 // pred_check_branch
    %23 = sbr.rel (0) target = $region13
  $region12: #{tpu_custom_call.1} parent=0 // pred_region
    _
  $region13: #{tpu_custom_call.1} parent=0 // pred_fallthru
    _
  // Predicated region
  $region14: #{tpu_custom_call.1} parent=0 // pred_check
    _
  $region15: #{tpu_custom_call.1} parent=0 // pred_check_branch
    %25 = sbr.rel (0) target = $region17
  $region16: #{tpu_custom_call.1} parent=0 // pred_region
    _
  $region17: #{tpu_custom_call.1} parent=0 // pred_fallthru
    _
  // Predicated region
  $region18: #{tpu_custom_call.1} parent=0 // pred_check
    _
  $region19: #{tpu_custom_call.1} parent=0 // pred_check_branch
    %27 = sbr.rel (0) target = $region21
  $region20: #{tpu_custom_call.1} parent=0 // pred_region
    _
  $region21: #{tpu_custom_call.1} parent=0 // pred_fallthru
    _
  // Predicated region
  $region22: #{tpu_custom_call.1} parent=0 // pred_check
    _
  $region23: #{tpu_custom_call.1} parent=0 // pred_check_branch
    %29 = sbr.rel (0) target = $region25
  $region24: #{tpu_custom_call.1} parent=0 // pred_region
    _
  $region25: #{tpu_custom_call.1} parent=0 // pred_fallthru
    _
  // Predicated region
  $region26: #{tpu_custom_call.1} parent=0 // pred_check
    _
  $region27: #{tpu_custom_call.1} parent=0 // pred_check_branch
    %31 = sbr.rel (0) target = $region29
  $region28: #{tpu_custom_call.1} parent=0 // pred_region
    _
  $region29: #{tpu_custom_call.1} parent=0 // pred_fallthru
    _
  // Predicated region
  $region30: #{tpu_custom_call.1} parent=0 // pred_check
    _
  $region31: #{tpu_custom_call.1} parent=0 // pred_check_branch
    %33 = sbr.rel (0) target = $region33
  $region32: #{tpu_custom_call.1} parent=0 // pred_region
    _
  $region33: #{tpu_custom_call.1} parent=0 // pred_fallthru
    _
  // Predicated region
  $region34: #{tpu_custom_call.1} parent=0 // pred_check
    _
  $region35: #{tpu_custom_call.1} parent=0 // pred_check_branch
    %35 = sbr.rel (0) target = $region37
  $region36: #{tpu_custom_call.1} parent=0 // pred_region
    _
  $region37: #{tpu_custom_call.1} parent=0 // pred_fallthru
    _
  // Predicated region
  $region38: #{tpu_custom_call.1} parent=0 // pred_check
    _
  $region39: #{tpu_custom_call.1} parent=0 // pred_check_branch
    %37 = sbr.rel (0) target = $region41
  $region40: #{tpu_custom_call.1} parent=0 // pred_region
    _
  $region41: #{tpu_custom_call.1} parent=0 // pred_fallthru
    _
  // Predicated region
  $region42: #{tpu_custom_call.1} parent=0 // pred_check
    _
  $region43: #{tpu_custom_call.1} parent=0 // pred_check_branch
    %39 = sbr.rel (0) target = $region45
  $region44: #{tpu_custom_call.1} parent=0 // pred_region
    _
  $region45: #{tpu_custom_call.1} parent=0 // pred_fallthru
    _
  %v40 = vld [vmem:[%s0] sm:$0xff]
  %v41 = vld [vmem:[%s0 + $0x8] sm:$0xff]
  %v42 = vld [vmem:[%s0 + $0x10] sm:$0xff]
  %v43 = vld [vmem:[%s0 + $0x18] sm:$0xff]
  %v44 = vld [vmem:[%s0 + $0x20] sm:$0xff]
  %v45 = vld [vmem:[%s0 + $0x28] sm:$0xff]
  %v46 = vld [vmem:[%s0 + $0x30] sm:$0xff]
  %v47 = vld [vmem:[%s0 + $0x38] sm:$0xff]
  %v48 = vld [vmem:[%s1] sm:$0xff]
  %v49 = vld [vmem:[%s1 + $0x8] sm:$0xff]
  %v50 = vld [vmem:[%s1 + $0x10] sm:$0xff]
  %v51 = vld [vmem:[%s1 + $0x18] sm:$0xff]
  %v52 = vld [vmem:[%s1 + $0x20] sm:$0xff]
  %v53 = vld [vmem:[%s1 + $0x28] sm:$0xff]
  %v54 = vld [vmem:[%s1 + $0x30] sm:$0xff]
  %v55 = vld [vmem:[%s1 + $0x38] sm:$0xff]
  %v56 = vld [vmem:[%s1 + $0x40] sm:$0xff]
  %v57 = vld [vmem:[%s1 + $0x48] sm:$0xff]
  %v58 = vld [vmem:[%s1 + $0x50] sm:$0xff]
  %v59 = vld [vmem:[%s1 + $0x58] sm:$0xff]
  %v60 = vld [vmem:[%s1 + $0x60] sm:$0xff]
  %v61 = vld [vmem:[%s1 + $0x68] sm:$0xff]
  %v62 = vld [vmem:[%s1 + $0x70] sm:$0xff]
  %v63 = vld [vmem:[%s1 + $0x78] sm:$0xff]
  %v64 = vld [vmem:[%s1 + $0x80] sm:$0xff]
  %v65 = vld [vmem:[%s1 + $0x88] sm:$0xff]
  %v66 = vld [vmem:[%s1 + $0x90] sm:$0xff]
  %v67 = vld [vmem:[%s1 + $0x98] sm:$0xff]
  %v68 = vld [vmem:[%s1 + $0xa0] sm:$0xff]
  %v69 = vld [vmem:[%s1 + $0xa8] sm:$0xff]
  %v70 = vld [vmem:[%s1 + $0xb0] sm:$0xff]
  %v71 = vld [vmem:[%s1 + $0xb8] sm:$0xff]
  %v72 = vld [vmem:[%s1 + $0xc0] sm:$0xff]
  %v73 = vld [vmem:[%s1 + $0xc8] sm:$0xff]
  %v74 = vld [vmem:[%s1 + $0xd0] sm:$0xff]
  %v75 = vld [vmem:[%s1 + $0xd8] sm:$0xff]
  %v76 = vld [vmem:[%s1 + $0xe0] sm:$0xff]
  %v77 = vld [vmem:[%s1 + $0xe8] sm:$0xff]
  %v78 = vld [vmem:[%s1 + $0xf0] sm:$0xff]
  %v79 = vld [vmem:[%s1 + $0xf8] sm:$0xff]
  %v80 = vld [vmem:[%s2] sm:$0xf]
  %v81 = vld [vmem:[%s2 + $0x4] sm:$0xf]
  %v82 = vld [vmem:[%s2 + $0x8] sm:$0xf]
  %v83 = vld [vmem:[%s2 + $0xc] sm:$0xf]
  %v84 = vld [vmem:[%s2 + $0x10] sm:$0xf]
  %v85 = vld [vmem:[%s2 + $0x14] sm:$0xf]
  %v86 = vld [vmem:[%s2 + $0x18] sm:$0xf]
  %v87 = vld [vmem:[%s2 + $0x1c] sm:$0xf]
  %v88 = vld [vmem:[%s2 + $0x20] sm:$0xf]
  %v89 = vld [vmem:[%s2 + $0x24] sm:$0xf]
  %v90 = vld [vmem:[%s2 + $0x28] sm:$0xf]
  %v91 = vld [vmem:[%s2 + $0x2c] sm:$0xf]
  %v92 = vld [vmem:[%s2 + $0x30] sm:$0xf]
  %v93 = vld [vmem:[%s2 + $0x34] sm:$0xf]
  %v94 = vld [vmem:[%s2 + $0x38] sm:$0xf]
  %v95 = vld [vmem:[%s2 + $0x3c] sm:$0xf]
  %v96 = vld [vmem:[%s2 + $0x40] sm:$0xf]
  %v97 = vld [vmem:[%s2 + $0x44] sm:$0xf]
  %v98 = vld [vmem:[%s2 + $0x48] sm:$0xf]
  %v99 = vld [vmem:[%s2 + $0x4c] sm:$0xf]
  %v100 = vld [vmem:[%s2 + $0x50] sm:$0xf]
  %v101 = vld [vmem:[%s2 + $0x54] sm:$0xf]
  %v102 = vld [vmem:[%s2 + $0x58] sm:$0xf]
  %v103 = vld [vmem:[%s2 + $0x5c] sm:$0xf]
  %v104 = vld [vmem:[%s2 + $0x60] sm:$0xf]
  %v105 = vld [vmem:[%s2 + $0x64] sm:$0xf]
  %v106 = vld [vmem:[%s2 + $0x68] sm:$0xf]
  %v107 = vld [vmem:[%s2 + $0x6c] sm:$0xf]
  %v108 = vld [vmem:[%s2 + $0x70] sm:$0xf]
  %v109 = vld [vmem:[%s2 + $0x74] sm:$0xf]
  %v110 = vld [vmem:[%s2 + $0x78] sm:$0xf]
  %v111 = vld [vmem:[%s2 + $0x7c] sm:$0xf]
  %v112 = vunpack.c.l.bf16 %v80
  %v113 = vunpack.c.l.bf16 %v81
  %v114 = vunpack.c.l.bf16 %v82
  %v115 = vunpack.c.l.bf16 %v83
  %v116 = vunpack.c.l.bf16 %v84
  %v117 = vunpack.c.l.bf16 %v85
  %v118 = vunpack.c.l.bf16 %v86
  %v119 = vunpack.c.l.bf16 %v87
  %v120 = vunpack.c.l.bf16 %v88
  %v121 = vunpack.c.l.bf16 %v89
  %v122 = vunpack.c.l.bf16 %v90
  %v123 = vunpack.c.l.bf16 %v91
  %v124 = vunpack.c.l.bf16 %v92
  %v125 = vunpack.c.l.bf16 %v93
  %v126 = vunpack.c.l.bf16 %v94
  %v127 = vunpack.c.l.bf16 %v95
  %v128 = vunpack.c.l.bf16 %v96
  %v129 = vunpack.c.l.bf16 %v97
  %v130 = vunpack.c.l.bf16 %v98
  %v131 = vunpack.c.l.bf16 %v99
  %v132 = vunpack.c.l.bf16 %v100
  %v133 = vunpack.c.l.bf16 %v101
  %v134 = vunpack.c.l.bf16 %v102
  %v135 = vunpack.c.l.bf16 %v103
  %v136 = vunpack.c.l.bf16 %v104
  %v137 = vunpack.c.l.bf16 %v105
  %v138 = vunpack.c.l.bf16 %v106
  %v139 = vunpack.c.l.bf16 %v107
  %v140 = vunpack.c.l.bf16 %v108
  %v141 = vunpack.c.l.bf16 %v109
  %v142 = vunpack.c.l.bf16 %v110
  %v143 = vunpack.c.l.bf16 %v111
  %v144 = vld [vmem:[%s3] sm:$0xf]
  %v145 = vld [vmem:[%s3 + $0x4] sm:$0xf]
  %v146 = vld [vmem:[%s3 + $0x8] sm:$0xf]
  %v147 = vld [vmem:[%s3 + $0xc] sm:$0xf]
  %v148 = vld [vmem:[%s3 + $0x10] sm:$0xf]
  %v149 = vld [vmem:[%s3 + $0x14] sm:$0xf]
  %v150 = vld [vmem:[%s3 + $0x18] sm:$0xf]
  %v151 = vld [vmem:[%s3 + $0x1c] sm:$0xf]
  %v152 = vld [vmem:[%s3 + $0x20] sm:$0xf]
  %v153 = vld [vmem:[%s3 + $0x24] sm:$0xf]
  %v154 = vld [vmem:[%s3 + $0x28] sm:$0xf]
  %v155 = vld [vmem:[%s3 + $0x2c] sm:$0xf]
  %v156 = vld [vmem:[%s3 + $0x30] sm:$0xf]
  %v157 = vld [vmem:[%s3 + $0x34] sm:$0xf]
  %v158 = vld [vmem:[%s3 + $0x38] sm:$0xf]
  %v159 = vld [vmem:[%s3 + $0x3c] sm:$0xf]
  %v160 = vld [vmem:[%s3 + $0x40] sm:$0xf]
  %v161 = vld [vmem:[%s3 + $0x44] sm:$0xf]
  %v162 = vld [vmem:[%s3 + $0x48] sm:$0xf]
  %v163 = vld [vmem:[%s3 + $0x4c] sm:$0xf]
  %v164 = vld [vmem:[%s3 + $0x50] sm:$0xf]
  %v165 = vld [vmem:[%s3 + $0x54] sm:$0xf]
  %v166 = vld [vmem:[%s3 + $0x58] sm:$0xf]
  %v167 = vld [vmem:[%s3 + $0x5c] sm:$0xf]
  %v168 = vld [vmem:[%s3 + $0x60] sm:$0xf]
  %v169 = vld [vmem:[%s3 + $0x64] sm:$0xf]
  %v170 = vld [vmem:[%s3 + $0x68] sm:$0xf]
  %v171 = vld [vmem:[%s3 + $0x6c] sm:$0xf]
  %v172 = vld [vmem:[%s3 + $0x70] sm:$0xf]
  %v173 = vld [vmem:[%s3 + $0x74] sm:$0xf]
  %v174 = vld [vmem:[%s3 + $0x78] sm:$0xf]
  %v175 = vld [vmem:[%s3 + $0x7c] sm:$0xf]
  %v176 = vunpack.c.l.bf16 %v144
  %v177 = vunpack.c.l.bf16 %v145
  %v178 = vunpack.c.l.bf16 %v146
  %v179 = vunpack.c.l.bf16 %v147
  %v180 = vunpack.c.l.bf16 %v148
  %v181 = vunpack.c.l.bf16 %v149
  %v182 = vunpack.c.l.bf16 %v150
  %v183 = vunpack.c.l.bf16 %v151
  %v184 = vunpack.c.l.bf16 %v152
  %v185 = vunpack.c.l.bf16 %v153
  %v186 = vunpack.c.l.bf16 %v154
  %v187 = vunpack.c.l.bf16 %v155
  %v188 = vunpack.c.l.bf16 %v156
  %v189 = vunpack.c.l.bf16 %v157
  %v190 = vunpack.c.l.bf16 %v158
  %v191 = vunpack.c.l.bf16 %v159
  %v192 = vunpack.c.l.bf16 %v160
  %v193 = vunpack.c.l.bf16 %v161
  %v194 = vunpack.c.l.bf16 %v162
  %v195 = vunpack.c.l.bf16 %v163
  %v196 = vunpack.c.l.bf16 %v164
  %v197 = vunpack.c.l.bf16 %v165
  %v198 = vunpack.c.l.bf16 %v166
  %v199 = vunpack.c.l.bf16 %v167
  %v200 = vunpack.c.l.bf16 %v168
  %v201 = vunpack.c.l.bf16 %v169
  %v202 = vunpack.c.l.bf16 %v170
  %v203 = vunpack.c.l.bf16 %v171
  %v204 = vunpack.c.l.bf16 %v172
  %v205 = vunpack.c.l.bf16 %v173
  %v206 = vunpack.c.l.bf16 %v174
  %v207 = vunpack.c.l.bf16 %v175
  %v208 = vld [vmem:[%s4] sm:$0xff]
  %v209 = vld [vmem:[%s4 + $0x8] sm:$0xff]
  %v210 = vld [vmem:[%s4 + $0x10] sm:$0xff]
  %v211 = vld [vmem:[%s4 + $0x18] sm:$0xff]
  %v212 = vld [vmem:[%s4 + $0x20] sm:$0xff]
  %v213 = vld [vmem:[%s4 + $0x28] sm:$0xff]
  %v214 = vld [vmem:[%s4 + $0x30] sm:$0xff]
  %v215 = vld [vmem:[%s4 + $0x38] sm:$0xff]
  %v216 = vunpack.c.l.bf16 %v208
  %v217 = vunpack.c.h.bf16 %v208
  %v218 = vunpack.c.l.bf16 %v209
  %v219 = vunpack.c.h.bf16 %v209
  %v220 = vunpack.c.l.bf16 %v210
  %v221 = vunpack.c.h.bf16 %v210
  %v222 = vunpack.c.l.bf16 %v211
  %v223 = vunpack.c.h.bf16 %v211
  %v224 = vunpack.c.l.bf16 %v212
  %v225 = vunpack.c.h.bf16 %v212
  %v226 = vunpack.c.l.bf16 %v213
  %v227 = vunpack.c.h.bf16 %v213
  %v228 = vunpack.c.l.bf16 %v214
  %v229 = vunpack.c.h.bf16 %v214
  %v230 = vunpack.c.l.bf16 %v215
  %v231 = vunpack.c.h.bf16 %v215
  %v232 = vld [vmem:[%s5] sm:$0xff]
  %v233 = vld [vmem:[%s5 + $0x8] sm:$0xff]
  %v234 = vld [vmem:[%s5 + $0x10] sm:$0xff]
  %v235 = vld [vmem:[%s5 + $0x18] sm:$0xff]
  %v236 = vld [vmem:[%s6] sm:$0x1]
  %v238 = vlaneseq
  %v239 = vshrl.u32 %v238, 7
  %v240 = vsub.s32 0, %v239
  %v241 = vrot.slane %v236, %v240
  %vm243 = vcmask 261120
  %v245 = vsel %vm243, %v40, 0
  %v248 = vsel %vm243, %v41, 0
  %v251 = vsel %vm243, %v42, 0
  %v254 = vsel %vm243, %v43, 0
  %v257 = vsel %vm243, %v44, 0
  %v260 = vsel %vm243, %v45, 0
  %v263 = vsel %vm243, %v46, 0
  %v266 = vsel %vm243, %v47, 0
  %268 = vmatprep.subr.mxu0 0.0
  %269 = vmatpush1.msra.mxu0 %v232
  %270 = vmatprep.subr.mxu0 0.0
  %271 = vmatpush1.msra.mxu0 %v233
  %272 = vmatprep.subr.mxu0 0.0
  %273 = vmatpush1.msra.mxu0 %v234
  %274 = vmatprep.subr.mxu0 0.0
  %275 = vmatpush1.msra.mxu0 %v235
  %276 = vmatprep.subr.mxu0 0.0
  %277 = vmatpush1.msra.mxu0 0.0
  %278 = vmatprep.subr.mxu0 0.0
  %279 = vmatpush1.msra.mxu0 0.0
  %280 = vmatprep.subr.mxu0 0.0
  %281 = vmatpush1.msra.mxu0 0.0
  %282 = vmatprep.subr.mxu0 0.0
  %283 = vmatpush1.msra.mxu0 0.0
  %284 = vmatprep.subr.mxu0 0.0
  %285 = vmatpush1.msra.mxu0 0.0
  %286 = vmatprep.subr.mxu0 0.0
  %287 = vmatpush1.msra.mxu0 0.0
  %288 = vmatprep.subr.mxu0 0.0
  %289 = vmatpush1.msra.mxu0 0.0
  %290 = vmatprep.subr.mxu0 0.0
  %291 = vmatpush1.msra.mxu0 0.0
  %292 = vmatprep.subr.mxu0 0.0
  %293 = vmatpush1.msra.mxu0 0.0
  %294 = vmatprep.subr.mxu0 0.0
  %295 = vmatpush1.msra.mxu0 0.0
  %296 = vmatprep.subr.mxu0 0.0
  %297 = vmatpush1.msra.mxu0 0.0
  %298 = vmatprep.subr.mxu0 0.0
  %299 = vmatpush1.msra.mxu0 0.0
  %300 = vmatprep.subr.mxu0 0.0
  %301 = vmatpush1.msra.mxu0 0.0
  %302 = vmatprep.subr.mxu0 0.0
  %303 = vmatpush1.msra.mxu0 0.0
  %304 = vmatprep.subr.mxu0 0.0
  %305 = vmatpush1.msra.mxu0 0.0
  %306 = vmatprep.subr.mxu0 0.0
  %307 = vmatpush1.msra.mxu0 0.0
  %308 = vmatprep.subr.mxu0 0.0
  %309 = vmatpush1.msra.mxu0 0.0
  %310 = vmatprep.subr.mxu0 0.0
  %311 = vmatpush1.msra.mxu0 0.0
  %312 = vmatprep.subr.mxu0 0.0
  %313 = vmatpush1.msra.mxu0 0.0
  %314 = vmatprep.subr.mxu0 0.0
  %315 = vmatpush1.msra.mxu0 0.0
  %316 = vmatprep.subr.mxu0 0.0
  %317 = vmatpush1.msra.mxu0 0.0
  %318 = vmatprep.subr.mxu0 0.0
  %319 = vmatpush1.msra.mxu0 0.0
  %320 = vmatprep.subr.mxu0 0.0
  %321 = vmatpush1.msra.mxu0 0.0
  %322 = vmatprep.subr.mxu0 0.0
  %323 = vmatpush1.msra.mxu0 0.0
  %324 = vmatprep.subr.mxu0 0.0
  %325 = vmatpush1.msra.mxu0 0.0
  %326 = vmatprep.subr.mxu0 0.0
  %327 = vmatpush1.msra.mxu0 0.0
  %328 = vmatprep.subr.mxu0 0.0
  %329 = vmatpush1.msra.mxu0 0.0
  %330 = vmatprep.subr.mxu0 0.0
  %331 = vmatpush1.msra.mxu0 0.0
  %332 = vmatprep.mubr.f32.mxu0 0.0
  %333 = vmatmul.mubr.f32.gmra.mrb[0].mxu0 %v245
  %v334 = vpop.f32.mrb[0].mxu0
  %v335 = vadd.f32 %v241, %v334
  %v336 = vpop.f32.mrb[0].mxu0
  %337 = vmatprep.mubr.f32.mxu0 0.0
  %338 = vmatmul.mubr.f32.gmra.mrb[0].mxu0 %v248
  %v339 = vpop.f32.mrb[0].mxu0
  %v340 = vadd.f32 %v241, %v339
  %v341 = vpop.f32.mrb[0].mxu0
  %342 = vmatprep.mubr.f32.mxu0 0.0
  %343 = vmatmul.mubr.f32.gmra.mrb[0].mxu0 %v251
  %v344 = vpop.f32.mrb[0].mxu0
  %v345 = vadd.f32 %v241, %v344
  %v346 = vpop.f32.mrb[0].mxu0
  %347 = vmatprep.mubr.f32.mxu0 0.0
  %348 = vmatmul.mubr.f32.gmra.mrb[0].mxu0 %v254
  %v349 = vpop.f32.mrb[0].mxu0
  %v350 = vadd.f32 %v241, %v349
  %v351 = vpop.f32.mrb[0].mxu0
  %352 = vmatprep.mubr.f32.mxu0 0.0
  %353 = vmatmul.mubr.f32.gmra.mrb[0].mxu0 %v257
  %v354 = vpop.f32.mrb[0].mxu0
  %v355 = vadd.f32 %v241, %v354
  %v356 = vpop.f32.mrb[0].mxu0
  %357 = vmatprep.mubr.f32.mxu0 0.0
  %358 = vmatmul.mubr.f32.gmra.mrb[0].mxu0 %v260
  %v359 = vpop.f32.mrb[0].mxu0
  %v360 = vadd.f32 %v241, %v359
  %v361 = vpop.f32.mrb[0].mxu0
  %362 = vmatprep.mubr.f32.mxu0 0.0
  %363 = vmatmul.mubr.f32.gmra.mrb[0].mxu0 %v263
  %v364 = vpop.f32.mrb[0].mxu0
  %v365 = vadd.f32 %v241, %v364
  %v366 = vpop.f32.mrb[0].mxu0
  %367 = vmatprep.mubr.f32.mxu0 0.0
  %368 = vmatmul.mubr.f32.gmra.mrb[0].mxu0 %v266
  %v369 = vpop.f32.mrb[0].mxu0
  %v370 = vadd.f32 %v241, %v369
  %v371 = vpop.f32.mrb[0].mxu0
  %372 = vdwg.mxu0
  %v373 = vld [vmem:[%s7] sm:$0xff]
  %v374 = vld [vmem:[%s7 + $0x8] sm:$0xff]
  %v375 = vld [vmem:[%s7 + $0x10] sm:$0xff]
  %v376 = vld [vmem:[%s7 + $0x18] sm:$0xff]
  %v377 = vld [vmem:[%s8] sm:$0x1]
  %v379 = vlaneseq
  %v380 = vshrl.u32 %v379, 7
  %v381 = vsub.s32 0, %v380
  %v382 = vrot.slane %v377, %v381
  %v385 = vsel %vm243, %v48, 0
  %v388 = vsel %vm243, %v49, 0
  %v391 = vsel %vm243, %v50, 0
  %v394 = vsel %vm243, %v51, 0
  %v397 = vsel %vm243, %v52, 0
  %v400 = vsel %vm243, %v53, 0
  %v403 = vsel %vm243, %v54, 0
  %v406 = vsel %vm243, %v55, 0
  %v409 = vsel %vm243, %v56, 0
  %v412 = vsel %vm243, %v57, 0
  %v415 = vsel %vm243, %v58, 0
  %v418 = vsel %vm243, %v59, 0
  %v421 = vsel %vm243, %v60, 0
  %v424 = vsel %vm243, %v61, 0
  %v427 = vsel %vm243, %v62, 0
  %v430 = vsel %vm243, %v63, 0
  %v433 = vsel %vm243, %v64, 0
  %v436 = vsel %vm243, %v65, 0
  %v439 = vsel %vm243, %v66, 0
  %v442 = vsel %vm243, %v67, 0
  %v445 = vsel %vm243, %v68, 0
  %v448 = vsel %vm243, %v69, 0
  %v451 = vsel %vm243, %v70, 0
  %v454 = vsel %vm243, %v71, 0
  %v457 = vsel %vm243, %v72, 0
  %v460 = vsel %vm243, %v73, 0
  %v463 = vsel %vm243, %v74, 0
  %v466 = vsel %vm243, %v75, 0
  %v469 = vsel %vm243, %v76, 0
  %v472 = vsel %vm243, %v77, 0
  %v475 = vsel %vm243, %v78, 0
  %v478 = vsel %vm243, %v79, 0
  %480 = vmatprep.subr.mxu0 0.0
  %481 = vmatpush1.msra.mxu0 %v373
  %482 = vmatprep.subr.mxu0 0.0
  %483 = vmatpush1.msra.mxu0 %v374
  %484 = vmatprep.subr.mxu0 0.0
  %485 = vmatpush1.msra.mxu0 %v375
  %486 = vmatprep.subr.mxu0 0.0
  %487 = vmatpush1.msra.mxu0 %v376
  %488 = vmatprep.subr.mxu0 0.0
  %489 = vmatpush1.msra.mxu0 0.0
  %490 = vmatprep.subr.mxu0 0.0
  %491 = vmatpush1.msra.mxu0 0.0
  %492 = vmatprep.subr.mxu0 0.0
  %493 = vmatpush1.msra.mxu0 0.0
  %494 = vmatprep.subr.mxu0 0.0
  %495 = vmatpush1.msra.mxu0 0.0
  %496 = vmatprep.subr.mxu0 0.0
  %497 = vmatpush1.msra.mxu0 0.0
  %498 = vmatprep.subr.mxu0 0.0
  %499 = vmatpush1.msra.mxu0 0.0
  %500 = vmatprep.subr.mxu0 0.0
  %501 = vmatpush1.msra.mxu0 0.0
  %502 = vmatprep.subr.mxu0 0.0
  %503 = vmatpush1.msra.mxu0 0.0
  %504 = vmatprep.subr.mxu0 0.0
  %505 = vmatpush1.msra.mxu0 0.0
  %506 = vmatprep.subr.mxu0 0.0
  %507 = vmatpush1.msra.mxu0 0.0
  %508 = vmatprep.subr.mxu0 0.0
  %509 = vmatpush1.msra.mxu0 0.0
  %510 = vmatprep.subr.mxu0 0.0
  %511 = vmatpush1.msra.mxu0 0.0
  %512 = vmatprep.subr.mxu0 0.0
  %513 = vmatpush1.msra.mxu0 0.0
  %514 = vmatprep.subr.mxu0 0.0
  %515 = vmatpush1.msra.mxu0 0.0
  %516 = vmatprep.subr.mxu0 0.0
  %517 = vmatpush1.msra.mxu0 0.0
  %518 = vmatprep.subr.mxu0 0.0
  %519 = vmatpush1.msra.mxu0 0.0
  %520 = vmatprep.subr.mxu0 0.0
  %521 = vmatpush1.msra.mxu0 0.0
  %522 = vmatprep.subr.mxu0 0.0
  %523 = vmatpush1.msra.mxu0 0.0
  %524 = vmatprep.subr.mxu0 0.0
  %525 = vmatpush1.msra.mxu0 0.0
  %526 = vmatprep.subr.mxu0 0.0
  %527 = vmatpush1.msra.mxu0 0.0
  %528 = vmatprep.subr.mxu0 0.0
  %529 = vmatpush1.msra.mxu0 0.0
  %530 = vmatprep.subr.mxu0 0.0
  %531 = vmatpush1.msra.mxu0 0.0
  %532 = vmatprep.subr.mxu0 0.0
  %533 = vmatpush1.msra.mxu0 0.0
  %534 = vmatprep.subr.mxu0 0.0
  %535 = vmatpush1.msra.mxu0 0.0
  %536 = vmatprep.subr.mxu0 0.0
  %537 = vmatpush1.msra.mxu0 0.0
  %538 = vmatprep.subr.mxu0 0.0
  %539 = vmatpush1.msra.mxu0 0.0
  %540 = vmatprep.subr.mxu0 0.0
  %541 = vmatpush1.msra.mxu0 0.0
  %542 = vmatprep.subr.mxu0 0.0
  %543 = vmatpush1.msra.mxu0 0.0
  %544 = vmatprep.mubr.f32.mxu0 0.0
  %545 = vmatmul.mubr.f32.gmra.mrb[0].mxu0 %v385
  %v546 = vpop.f32.mrb[0].mxu0
  %v547 = vadd.f32 %v382, %v546
  %v548 = vpop.f32.mrb[0].mxu0
  %549 = vmatprep.mubr.f32.mxu0 0.0
  %550 = vmatmul.mubr.f32.gmra.mrb[0].mxu0 %v388
  %v551 = vpop.f32.mrb[0].mxu0
  %v552 = vadd.f32 %v382, %v551
  %v553 = vpop.f32.mrb[0].mxu0
  %554 = vmatprep.mubr.f32.mxu0 0.0
  %555 = vmatmul.mubr.f32.gmra.mrb[0].mxu0 %v391
  %v556 = vpop.f32.mrb[0].mxu0
  %v557 = vadd.f32 %v382, %v556
  %v558 = vpop.f32.mrb[0].mxu0
  %559 = vmatprep.mubr.f32.mxu0 0.0
  %560 = vmatmul.mubr.f32.gmra.mrb[0].mxu0 %v394
  %v561 = vpop.f32.mrb[0].mxu0
  %v562 = vadd.f32 %v382, %v561
  %v563 = vpop.f32.mrb[0].mxu0
  %564 = vmatprep.mubr.f32.mxu0 0.0
  %565 = vmatmul.mubr.f32.gmra.mrb[0].mxu0 %v397
  %v566 = vpop.f32.mrb[0].mxu0
  %v567 = vadd.f32 %v382, %v566
  %v568 = vpop.f32.mrb[0].mxu0
  %569 = vmatprep.mubr.f32.mxu0 0.0
  %570 = vmatmul.mubr.f32.gmra.mrb[0].mxu0 %v400
  %v571 = vpop.f32.mrb[0].mxu0
  %v572 = vadd.f32 %v382, %v571
  %v573 = vpop.f32.mrb[0].mxu0
  %574 = vmatprep.mubr.f32.mxu0 0.0
  %575 = vmatmul.mubr.f32.gmra.mrb[0].mxu0 %v403
  %v576 = vpop.f32.mrb[0].mxu0
  %v577 = vadd.f32 %v382, %v576
  %v578 = vpop.f32.mrb[0].mxu0
  %579 = vmatprep.mubr.f32.mxu0 0.0
  %580 = vmatmul.mubr.f32.gmra.mrb[0].mxu0 %v406
  %v581 = vpop.f32.mrb[0].mxu0
  %v582 = vadd.f32 %v382, %v581
  %v583 = vpop.f32.mrb[0].mxu0
  %584 = vmatprep.mubr.f32.mxu0 0.0
  %585 = vmatmul.mubr.f32.gmra.mrb[0].mxu0 %v409
  %v586 = vpop.f32.mrb[0].mxu0
  %v587 = vadd.f32 %v382, %v586
  %v588 = vpop.f32.mrb[0].mxu0
  %589 = vmatprep.mubr.f32.mxu0 0.0
  %590 = vmatmul.mubr.f32.gmra.mrb[0].mxu0 %v412
  %v591 = vpop.f32.mrb[0].mxu0
  %v592 = vadd.f32 %v382, %v591
  %v593 = vpop.f32.mrb[0].mxu0
  %594 = vmatprep.mubr.f32.mxu0 0.0
  %595 = vmatmul.mubr.f32.gmra.mrb[0].mxu0 %v415
  %v596 = vpop.f32.mrb[0].mxu0
  %v597 = vadd.f32 %v382, %v596
  %v598 = vpop.f32.mrb[0].mxu0
  %599 = vmatprep.mubr.f32.mxu0 0.0
  %600 = vmatmul.mubr.f32.gmra.mrb[0].mxu0 %v418
  %v601 = vpop.f32.mrb[0].mxu0
  %v602 = vadd.f32 %v382, %v601
  %v603 = vpop.f32.mrb[0].mxu0
  %604 = vmatprep.mubr.f32.mxu0 0.0
  %605 = vmatmul.mubr.f32.gmra.mrb[0].mxu0 %v421
  %v606 = vpop.f32.mrb[0].mxu0
  %v607 = vadd.f32 %v382, %v606
  %v608 = vpop.f32.mrb[0].mxu0
  %609 = vmatprep.mubr.f32.mxu0 0.0
  %610 = vmatmul.mubr.f32.gmra.mrb[0].mxu0 %v424
  %v611 = vpop.f32.mrb[0].mxu0
  %v612 = vadd.f32 %v382, %v611
  %v613 = vpop.f32.mrb[0].mxu0
  %614 = vmatprep.mubr.f32.mxu0 0.0
  %615 = vmatmul.mubr.f32.gmra.mrb[0].mxu0 %v427
  %v616 = vpop.f32.mrb[0].mxu0
  %v617 = vadd.f32 %v382, %v616
  %v618 = vpop.f32.mrb[0].mxu0
  %619 = vmatprep.mubr.f32.mxu0 0.0
  %620 = vmatmul.mubr.f32.gmra.mrb[0].mxu0 %v430
  %v621 = vpop.f32.mrb[0].mxu0
  %v622 = vadd.f32 %v382, %v621
  %v623 = vpop.f32.mrb[0].mxu0
  %624 = vmatprep.mubr.f32.mxu0 0.0
  %625 = vmatmul.mubr.f32.gmra.mrb[0].mxu0 %v433
  %v626 = vpop.f32.mrb[0].mxu0
  %v627 = vadd.f32 %v382, %v626
  %v628 = vpop.f32.mrb[0].mxu0
  %629 = vmatprep.mubr.f32.mxu0 0.0
  %630 = vmatmul.mubr.f32.gmra.mrb[0].mxu0 %v436
  %v631 = vpop.f32.mrb[0].mxu0
  %v632 = vadd.f32 %v382, %v631
  %v633 = vpop.f32.mrb[0].mxu0
  %634 = vmatprep.mubr.f32.mxu0 0.0
  %635 = vmatmul.mubr.f32.gmra.mrb[0].mxu0 %v439
  %v636 = vpop.f32.mrb[0].mxu0
  %v637 = vadd.f32 %v382, %v636
  %v638 = vpop.f32.mrb[0].mxu0
  %639 = vmatprep.mubr.f32.mxu0 0.0
  %640 = vmatmul.mubr.f32.gmra.mrb[0].mxu0 %v442
  %v641 = vpop.f32.mrb[0].mxu0
  %v642 = vadd.f32 %v382, %v641
  %v643 = vpop.f32.mrb[0].mxu0
  %644 = vmatprep.mubr.f32.mxu0 0.0
  %645 = vmatmul.mubr.f32.gmra.mrb[0].mxu0 %v445
  %v646 = vpop.f32.mrb[0].mxu0
  %v647 = vadd.f32 %v382, %v646
  %v648 = vpop.f32.mrb[0].mxu0
  %649 = vmatprep.mubr.f32.mxu0 0.0
  %650 = vmatmul.mubr.f32.gmra.mrb[0].mxu0 %v448
  %v651 = vpop.f32.mrb[0].mxu0
  %v652 = vadd.f32 %v382, %v651
  %v653 = vpop.f32.mrb[0].mxu0
  %654 = vmatprep.mubr.f32.mxu0 0.0
  %655 = vmatmul.mubr.f32.gmra.mrb[0].mxu0 %v451
  %v656 = vpop.f32.mrb[0].mxu0
  %v657 = vadd.f32 %v382, %v656
  %v658 = vpop.f32.mrb[0].mxu0
  %659 = vmatprep.mubr.f32.mxu0 0.0
  %660 = vmatmul.mubr.f32.gmra.mrb[0].mxu0 %v454
  %v661 = vpop.f32.mrb[0].mxu0
  %v662 = vadd.f32 %v382, %v661
  %v663 = vpop.f32.mrb[0].mxu0
  %664 = vmatprep.mubr.f32.mxu0 0.0
  %665 = vmatmul.mubr.f32.gmra.mrb[0].mxu0 %v457
  %v666 = vpop.f32.mrb[0].mxu0
  %v667 = vadd.f32 %v382, %v666
  %v668 = vpop.f32.mrb[0].mxu0
  %669 = vmatprep.mubr.f32.mxu0 0.0
  %670 = vmatmul.mubr.f32.gmra.mrb[0].mxu0 %v460
  %v671 = vpop.f32.mrb[0].mxu0
  %v672 = vadd.f32 %v382, %v671
  %v673 = vpop.f32.mrb[0].mxu0
  %674 = vmatprep.mubr.f32.mxu0 0.0
  %675 = vmatmul.mubr.f32.gmra.mrb[0].mxu0 %v463
  %v676 = vpop.f32.mrb[0].mxu0
  %v677 = vadd.f32 %v382, %v676
  %v678 = vpop.f32.mrb[0].mxu0
  %679 = vmatprep.mubr.f32.mxu0 0.0
  %680 = vmatmul.mubr.f32.gmra.mrb[0].mxu0 %v466
  %v681 = vpop.f32.mrb[0].mxu0
  %v682 = vadd.f32 %v382, %v681
  %v683 = vpop.f32.mrb[0].mxu0
  %684 = vmatprep.mubr.f32.mxu0 0.0
  %685 = vmatmul.mubr.f32.gmra.mrb[0].mxu0 %v469
  %v686 = vpop.f32.mrb[0].mxu0
  %v687 = vadd.f32 %v382, %v686
  %v688 = vpop.f32.mrb[0].mxu0
  %689 = vmatprep.mubr.f32.mxu0 0.0
  %690 = vmatmul.mubr.f32.gmra.mrb[0].mxu0 %v472
  %v691 = vpop.f32.mrb[0].mxu0
  %v692 = vadd.f32 %v382, %v691
  %v693 = vpop.f32.mrb[0].mxu0
  %694 = vmatprep.mubr.f32.mxu0 0.0
  %695 = vmatmul.mubr.f32.gmra.mrb[0].mxu0 %v475
  %v696 = vpop.f32.mrb[0].mxu0
  %v697 = vadd.f32 %v382, %v696
  %v698 = vpop.f32.mrb[0].mxu0
  %699 = vmatprep.mubr.f32.mxu0 0.0
  %700 = vmatmul.mubr.f32.gmra.mrb[0].mxu0 %v478
  %v701 = vpop.f32.mrb[0].mxu0
  %v702 = vadd.f32 %v382, %v701
  %v703 = vpop.f32.mrb[0].mxu0
  %704 = vdwg.mxu0
  %vm705 = vcmask 523264
  %v707 = vsel %vm705, %v112, 0
  %v710 = vsel %vm705, %v113, 0
  %v713 = vsel %vm705, %v114, 0
  %v716 = vsel %vm705, %v115, 0
  %v719 = vsel %vm705, %v116, 0
  %v722 = vsel %vm705, %v117, 0
  %v725 = vsel %vm705, %v118, 0
  %v728 = vsel %vm705, %v119, 0
  %v731 = vsel %vm705, %v120, 0
  %v734 = vsel %vm705, %v121, 0
  %v737 = vsel %vm705, %v122, 0
  %v740 = vsel %vm705, %v123, 0
  %v743 = vsel %vm705, %v124, 0
  %v746 = vsel %vm705, %v125, 0
  %v749 = vsel %vm705, %v126, 0
  %v752 = vsel %vm705, %v127, 0
  %v755 = vsel %vm705, %v128, 0
  %v758 = vsel %vm705, %v129, 0
  %v761 = vsel %vm705, %v130, 0
  %v764 = vsel %vm705, %v131, 0
  %v767 = vsel %vm705, %v132, 0
  %v770 = vsel %vm705, %v133, 0
  %v773 = vsel %vm705, %v134, 0
  %v776 = vsel %vm705, %v135, 0
  %v779 = vsel %vm705, %v136, 0
  %v782 = vsel %vm705, %v137, 0
  %v785 = vsel %vm705, %v138, 0
  %v788 = vsel %vm705, %v139, 0
  %v791 = vsel %vm705, %v140, 0
  %v794 = vsel %vm705, %v141, 0
  %v797 = vsel %vm705, %v142, 0
  %v800 = vsel %vm705, %v143, 0
  %802 = vmatprep.subr.mxu0 0.0
  %803 = vmatpush1.msra.mxu0 %v335
  %804 = vmatprep.subr.mxu0 0.0
  %805 = vmatpush1.msra.mxu0 %v340
  %806 = vmatprep.subr.mxu0 0.0
  %807 = vmatpush1.msra.mxu0 %v345
  %808 = vmatprep.subr.mxu0 0.0
  %809 = vmatpush1.msra.mxu0 %v350
  %810 = vmatprep.subr.mxu0 0.0
  %811 = vmatpush1.msra.mxu0 %v355
  %812 = vmatprep.subr.mxu0 0.0
  %813 = vmatpush1.msra.mxu0 %v360
  %814 = vmatprep.subr.mxu0 0.0
  %815 = vmatpush1.msra.mxu0 %v365
  %816 = vmatprep.subr.mxu0 0.0
  %817 = vmatpush1.msra.mxu0 %v370
  %818 = vmatprep.subr.mxu0 0.0
  %819 = vmatpush1.msra.mxu0 0.0
  %820 = vmatprep.subr.mxu0 0.0
  %821 = vmatpush1.msra.mxu0 0.0
  %822 = vmatprep.subr.mxu0 0.0
  %823 = vmatpush1.msra.mxu0 0.0
  %824 = vmatprep.subr.mxu0 0.0
  %825 = vmatpush1.msra.mxu0 0.0
  %826 = vmatprep.subr.mxu0 0.0
  %827 = vmatpush1.msra.mxu0 0.0
  %828 = vmatprep.subr.mxu0 0.0
  %829 = vmatpush1.msra.mxu0 0.0
  %830 = vmatprep.subr.mxu0 0.0
  %831 = vmatpush1.msra.mxu0 0.0
  %832 = vmatprep.subr.mxu0 0.0
  %833 = vmatpush1.msra.mxu0 0.0
  %834 = vmatprep.subr.mxu0 0.0
  %835 = vmatpush1.msra.mxu0 0.0
  %836 = vmatprep.subr.mxu0 0.0
  %837 = vmatpush1.msra.mxu0 0.0
  %838 = vmatprep.subr.mxu0 0.0
  %839 = vmatpush1.msra.mxu0 0.0
  %840 = vmatprep.subr.mxu0 0.0
  %841 = vmatpush1.msra.mxu0 0.0
  %842 = vmatprep.subr.mxu0 0.0
  %843 = vmatpush1.msra.mxu0 0.0
  %844 = vmatprep.subr.mxu0 0.0
  %845 = vmatpush1.msra.mxu0 0.0
  %846 = vmatprep.subr.mxu0 0.0
  %847 = vmatpush1.msra.mxu0 0.0
  %848 = vmatprep.subr.mxu0 0.0
  %849 = vmatpush1.msra.mxu0 0.0
  %850 = vmatprep.subr.mxu0 0.0
  %851 = vmatpush1.msra.mxu0 0.0
  %852 = vmatprep.subr.mxu0 0.0
  %853 = vmatpush1.msra.mxu0 0.0
  %854 = vmatprep.subr.mxu0 0.0
  %855 = vmatpush1.msra.mxu0 0.0
  %856 = vmatprep.subr.mxu0 0.0
  %857 = vmatpush1.msra.mxu0 0.0
  %858 = vmatprep.subr.mxu0 0.0
  %859 = vmatpush1.msra.mxu0 0.0
  %860 = vmatprep.subr.mxu0 0.0
  %861 = vmatpush1.msra.mxu0 0.0
  %862 = vmatprep.subr.mxu0 0.0
  %863 = vmatpush1.msra.mxu0 0.0
  %864 = vmatprep.subr.mxu0 0.0
  %865 = vmatpush1.msra.mxu0 0.0
  %866 = vmatprep.mubr.f32.mxu0 0.0
  %867 = vmatmul.mubr.f32.gmra.mrb[0].mxu0 %v707
  %v868 = vpop.f32.mrb[0].mxu0
  %v869 = vadd.f32 0.0, %v868
  %v870 = vpop.f32.mrb[0].mxu0
  %871 = vmatprep.mubr.f32.mxu0 0.0
  %872 = vmatmul.mubr.f32.gmra.mrb[0].mxu0 %v710
  %v873 = vpop.f32.mrb[0].mxu0
  %v874 = vadd.f32 0.0, %v873
  %v875 = vpop.f32.mrb[0].mxu0
  %876 = vmatprep.mubr.f32.mxu0 0.0
  %877 = vmatmul.mubr.f32.gmra.mrb[0].mxu0 %v713
  %v878 = vpop.f32.mrb[0].mxu0
  %v879 = vadd.f32 0.0, %v878
  %v880 = vpop.f32.mrb[0].mxu0
  %881 = vmatprep.mubr.f32.mxu0 0.0
  %882 = vmatmul.mubr.f32.gmra.mrb[0].mxu0 %v716
  %v883 = vpop.f32.mrb[0].mxu0
  %v884 = vadd.f32 0.0, %v883
  %v885 = vpop.f32.mrb[0].mxu0
  %886 = vmatprep.mubr.f32.mxu0 0.0
  %887 = vmatmul.mubr.f32.gmra.mrb[0].mxu0 %v719
  %v888 = vpop.f32.mrb[0].mxu0
  %v889 = vadd.f32 0.0, %v888
  %v890 = vpop.f32.mrb[0].mxu0
  %891 = vmatprep.mubr.f32.mxu0 0.0
  %892 = vmatmul.mubr.f32.gmra.mrb[0].mxu0 %v722
  %v893 = vpop.f32.mrb[0].mxu0
  %v894 = vadd.f32 0.0, %v893
  %v895 = vpop.f32.mrb[0].mxu0
  %896 = vmatprep.mubr.f32.mxu0 0.0
  %897 = vmatmul.mubr.f32.gmra.mrb[0].mxu0 %v725
  %v898 = vpop.f32.mrb[0].mxu0
  %v899 = vadd.f32 0.0, %v898
  %v900 = vpop.f32.mrb[0].mxu0
  %901 = vmatprep.mubr.f32.mxu0 0.0
  %902 = vmatmul.mubr.f32.gmra.mrb[0].mxu0 %v728
  %v903 = vpop.f32.mrb[0].mxu0
  %v904 = vadd.f32 0.0, %v903
  %v905 = vpop.f32.mrb[0].mxu0
  %906 = vmatprep.mubr.f32.mxu0 0.0
  %907 = vmatmul.mubr.f32.gmra.mrb[0].mxu0 %v731
  %v908 = vpop.f32.mrb[0].mxu0
  %v909 = vadd.f32 0.0, %v908
  %v910 = vpop.f32.mrb[0].mxu0
  %911 = vmatprep.mubr.f32.mxu0 0.0
  %912 = vmatmul.mubr.f32.gmra.mrb[0].mxu0 %v734
  %v913 = vpop.f32.mrb[0].mxu0
  %v914 = vadd.f32 0.0, %v913
  %v915 = vpop.f32.mrb[0].mxu0
  %916 = vmatprep.mubr.f32.mxu0 0.0
  %917 = vmatmul.mubr.f32.gmra.mrb[0].mxu0 %v737
  %v918 = vpop.f32.mrb[0].mxu0
  %v919 = vadd.f32 0.0, %v918
  %v920 = vpop.f32.mrb[0].mxu0
  %921 = vmatprep.mubr.f32.mxu0 0.0
  %922 = vmatmul.mubr.f32.gmra.mrb[0].mxu0 %v740
  %v923 = vpop.f32.mrb[0].mxu0
  %v924 = vadd.f32 0.0, %v923
  %v925 = vpop.f32.mrb[0].mxu0
  %926 = vmatprep.mubr.f32.mxu0 0.0
  %927 = vmatmul.mubr.f32.gmra.mrb[0].mxu0 %v743
  %v928 = vpop.f32.mrb[0].mxu0
  %v929 = vadd.f32 0.0, %v928
  %v930 = vpop.f32.mrb[0].mxu0
  %931 = vmatprep.mubr.f32.mxu0 0.0
  %932 = vmatmul.mubr.f32.gmra.mrb[0].mxu0 %v746
  %v933 = vpop.f32.mrb[0].mxu0
  %v934 = vadd.f32 0.0, %v933
  %v935 = vpop.f32.mrb[0].mxu0
  %936 = vmatprep.mubr.f32.mxu0 0.0
  %937 = vmatmul.mubr.f32.gmra.mrb[0].mxu0 %v749
  %v938 = vpop.f32.mrb[0].mxu0
  %v939 = vadd.f32 0.0, %v938
  %v940 = vpop.f32.mrb[0].mxu0
  %941 = vmatprep.mubr.f32.mxu0 0.0
  %942 = vmatmul.mubr.f32.gmra.mrb[0].mxu0 %v752
  %v943 = vpop.f32.mrb[0].mxu0
  %v944 = vadd.f32 0.0, %v943
  %v945 = vpop.f32.mrb[0].mxu0
  %946 = vmatprep.mubr.f32.mxu0 0.0
  %947 = vmatmul.mubr.f32.gmra.mrb[0].mxu0 %v755
  %v948 = vpop.f32.mrb[0].mxu0
  %v949 = vadd.f32 0.0, %v948
  %v950 = vpop.f32.mrb[0].mxu0
  %951 = vmatprep.mubr.f32.mxu0 0.0
  %952 = vmatmul.mubr.f32.gmra.mrb[0].mxu0 %v758
  %v953 = vpop.f32.mrb[0].mxu0
  %v954 = vadd.f32 0.0, %v953
  %v955 = vpop.f32.mrb[0].mxu0
  %956 = vmatprep.mubr.f32.mxu0 0.0
  %957 = vmatmul.mubr.f32.gmra.mrb[0].mxu0 %v761
  %v958 = vpop.f32.mrb[0].mxu0
  %v959 = vadd.f32 0.0, %v958
  %v960 = vpop.f32.mrb[0].mxu0
  %961 = vmatprep.mubr.f32.mxu0 0.0
  %962 = vmatmul.mubr.f32.gmra.mrb[0].mxu0 %v764
  %v963 = vpop.f32.mrb[0].mxu0
  %v964 = vadd.f32 0.0, %v963
  %v965 = vpop.f32.mrb[0].mxu0
  %966 = vmatprep.mubr.f32.mxu0 0.0
  %967 = vmatmul.mubr.f32.gmra.mrb[0].mxu0 %v767
  %v968 = vpop.f32.mrb[0].mxu0
  %v969 = vadd.f32 0.0, %v968
  %v970 = vpop.f32.mrb[0].mxu0
  %971 = vmatprep.mubr.f32.mxu0 0.0
  %972 = vmatmul.mubr.f32.gmra.mrb[0].mxu0 %v770
  %v973 = vpop.f32.mrb[0].mxu0
  %v974 = vadd.f32 0.0, %v973
  %v975 = vpop.f32.mrb[0].mxu0
  %976 = vmatprep.mubr.f32.mxu0 0.0
  %977 = vmatmul.mubr.f32.gmra.mrb[0].mxu0 %v773
  %v978 = vpop.f32.mrb[0].mxu0
  %v979 = vadd.f32 0.0, %v978
  %v980 = vpop.f32.mrb[0].mxu0
  %981 = vmatprep.mubr.f32.mxu0 0.0
  %982 = vmatmul.mubr.f32.gmra.mrb[0].mxu0 %v776
  %v983 = vpop.f32.mrb[0].mxu0
  %v984 = vadd.f32 0.0, %v983
  %v985 = vpop.f32.mrb[0].mxu0
  %986 = vmatprep.mubr.f32.mxu0 0.0
  %987 = vmatmul.mubr.f32.gmra.mrb[0].mxu0 %v779
  %v988 = vpop.f32.mrb[0].mxu0
  %v989 = vadd.f32 0.0, %v988
  %v990 = vpop.f32.mrb[0].mxu0
  %991 = vmatprep.mubr.f32.mxu0 0.0
  %992 = vmatmul.mubr.f32.gmra.mrb[0].mxu0 %v782
  %v993 = vpop.f32.mrb[0].mxu0
  %v994 = vadd.f32 0.0, %v993
  %v995 = vpop.f32.mrb[0].mxu0
  %996 = vmatprep.mubr.f32.mxu0 0.0
  %997 = vmatmul.mubr.f32.gmra.mrb[0].mxu0 %v785
  %v998 = vpop.f32.mrb[0].mxu0
  %v999 = vadd.f32 0.0, %v998
  %v1000 = vpop.f32.mrb[0].mxu0
  %1001 = vmatprep.mubr.f32.mxu0 0.0
  %1002 = vmatmul.mubr.f32.gmra.mrb[0].mxu0 %v788
  %v1003 = vpop.f32.mrb[0].mxu0
  %v1004 = vadd.f32 0.0, %v1003
  %v1005 = vpop.f32.mrb[0].mxu0
  %1006 = vmatprep.mubr.f32.mxu0 0.0
  %1007 = vmatmul.mubr.f32.gmra.mrb[0].mxu0 %v791
  %v1008 = vpop.f32.mrb[0].mxu0
  %v1009 = vadd.f32 0.0, %v1008
  %v1010 = vpop.f32.mrb[0].mxu0
  %1011 = vmatprep.mubr.f32.mxu0 0.0
  %1012 = vmatmul.mubr.f32.gmra.mrb[0].mxu0 %v794
  %v1013 = vpop.f32.mrb[0].mxu0
  %v1014 = vadd.f32 0.0, %v1013
  %v1015 = vpop.f32.mrb[0].mxu0
  %1016 = vmatprep.mubr.f32.mxu0 0.0
  %1017 = vmatmul.mubr.f32.gmra.mrb[0].mxu0 %v797
  %v1018 = vpop.f32.mrb[0].mxu0
  %v1019 = vadd.f32 0.0, %v1018
  %v1020 = vpop.f32.mrb[0].mxu0
  %1021 = vmatprep.mubr.f32.mxu0 0.0
  %1022 = vmatmul.mubr.f32.gmra.mrb[0].mxu0 %v800
  %v1023 = vpop.f32.mrb[0].mxu0
  %v1024 = vadd.f32 0.0, %v1023
  %v1025 = vpop.f32.mrb[0].mxu0
  %1026 = vdwg.mxu0
  %1035 = vrot.lane.b32.xlu0 %v335, 64
  %v1036 = vpop.permute.xlu0 %1035
  %1037 = vrot.lane.b32.xlu0 %v340, 64
  %v1038 = vpop.permute.xlu0 %1037
  %1039 = vrot.lane.b32.xlu0 %v345, 64
  %v1040 = vpop.permute.xlu0 %1039
  %1041 = vrot.lane.b32.xlu0 %v350, 64
  %v1042 = vpop.permute.xlu0 %1041
  %1043 = vrot.lane.b32.xlu0 %v355, 64
  %v1044 = vpop.permute.xlu0 %1043
  %1045 = vrot.lane.b32.xlu0 %v360, 64
  %v1046 = vpop.permute.xlu0 %1045
  %1047 = vrot.lane.b32.xlu0 %v365, 64
  %v1048 = vpop.permute.xlu0 %1047
  %1049 = vrot.lane.b32.xlu0 %v370, 64
  %v1050 = vpop.permute.xlu0 %1049
  %v1060 = vsel %vm705, %v176, 0
  %v1063 = vsel %vm705, %v177, 0
  %v1066 = vsel %vm705, %v178, 0
  %v1069 = vsel %vm705, %v179, 0
  %v1072 = vsel %vm705, %v180, 0
  %v1075 = vsel %vm705, %v181, 0
  %v1078 = vsel %vm705, %v182, 0
  %v1081 = vsel %vm705, %v183, 0
  %v1084 = vsel %vm705, %v184, 0
  %v1087 = vsel %vm705, %v185, 0
  %v1090 = vsel %vm705, %v186, 0
  %v1093 = vsel %vm705, %v187, 0
  %v1096 = vsel %vm705, %v188, 0
  %v1099 = vsel %vm705, %v189, 0
  %v1102 = vsel %vm705, %v190, 0
  %v1105 = vsel %vm705, %v191, 0
  %v1108 = vsel %vm705, %v192, 0
  %v1111 = vsel %vm705, %v193, 0
  %v1114 = vsel %vm705, %v194, 0
  %v1117 = vsel %vm705, %v195, 0
  %v1120 = vsel %vm705, %v196, 0
  %v1123 = vsel %vm705, %v197, 0
  %v1126 = vsel %vm705, %v198, 0
  %v1129 = vsel %vm705, %v199, 0
  %v1132 = vsel %vm705, %v200, 0
  %v1135 = vsel %vm705, %v201, 0
  %v1138 = vsel %vm705, %v202, 0
  %v1141 = vsel %vm705, %v203, 0
  %v1144 = vsel %vm705, %v204, 0
  %v1147 = vsel %vm705, %v205, 0
  %v1150 = vsel %vm705, %v206, 0
  %v1153 = vsel %vm705, %v207, 0
  %1155 = vmatprep.subr.mxu0 0.0
  %1156 = vmatpush1.msra.mxu0 %v1036
  %1157 = vmatprep.subr.mxu0 0.0
  %1158 = vmatpush1.msra.mxu0 %v1038
  %1159 = vmatprep.subr.mxu0 0.0
  %1160 = vmatpush1.msra.mxu0 %v1040
  %1161 = vmatprep.subr.mxu0 0.0
  %1162 = vmatpush1.msra.mxu0 %v1042
  %1163 = vmatprep.subr.mxu0 0.0
  %1164 = vmatpush1.msra.mxu0 %v1044
  %1165 = vmatprep.subr.mxu0 0.0
  %1166 = vmatpush1.msra.mxu0 %v1046
  %1167 = vmatprep.subr.mxu0 0.0
  %1168 = vmatpush1.msra.mxu0 %v1048
  %1169 = vmatprep.subr.mxu0 0.0
  %1170 = vmatpush1.msra.mxu0 %v1050
  %1171 = vmatprep.subr.mxu0 0.0
  %1172 = vmatpush1.msra.mxu0 0.0
  %1173 = vmatprep.subr.mxu0 0.0
  %1174 = vmatpush1.msra.mxu0 0.0
  %1175 = vmatprep.subr.mxu0 0.0
  %1176 = vmatpush1.msra.mxu0 0.0
  %1177 = vmatprep.subr.mxu0 0.0
  %1178 = vmatpush1.msra.mxu0 0.0
  %1179 = vmatprep.subr.mxu0 0.0
  %1180 = vmatpush1.msra.mxu0 0.0
  %1181 = vmatprep.subr.mxu0 0.0
  %1182 = vmatpush1.msra.mxu0 0.0
  %1183 = vmatprep.subr.mxu0 0.0
  %1184 = vmatpush1.msra.mxu0 0.0
  %1185 = vmatprep.subr.mxu0 0.0
  %1186 = vmatpush1.msra.mxu0 0.0
  %1187 = vmatprep.subr.mxu0 0.0
  %1188 = vmatpush1.msra.mxu0 0.0
  %1189 = vmatprep.subr.mxu0 0.0
  %1190 = vmatpush1.msra.mxu0 0.0
  %1191 = vmatprep.subr.mxu0 0.0
  %1192 = vmatpush1.msra.mxu0 0.0
  %1193 = vmatprep.subr.mxu0 0.0
  %1194 = vmatpush1.msra.mxu0 0.0
  %1195 = vmatprep.subr.mxu0 0.0
  %1196 = vmatpush1.msra.mxu0 0.0
  %1197 = vmatprep.subr.mxu0 0.0
  %1198 = vmatpush1.msra.mxu0 0.0
  %1199 = vmatprep.subr.mxu0 0.0
  %1200 = vmatpush1.msra.mxu0 0.0
  %1201 = vmatprep.subr.mxu0 0.0
  %1202 = vmatpush1.msra.mxu0 0.0
  %1203 = vmatprep.subr.mxu0 0.0
  %1204 = vmatpush1.msra.mxu0 0.0
  %1205 = vmatprep.subr.mxu0 0.0
  %1206 = vmatpush1.msra.mxu0 0.0
  %1207 = vmatprep.subr.mxu0 0.0
  %1208 = vmatpush1.msra.mxu0 0.0
  %1209 = vmatprep.subr.mxu0 0.0
  %1210 = vmatpush1.msra.mxu0 0.0
  %1211 = vmatprep.subr.mxu0 0.0
  %1212 = vmatpush1.msra.mxu0 0.0
  %1213 = vmatprep.subr.mxu0 0.0
  %1214 = vmatpush1.msra.mxu0 0.0
  %1215 = vmatprep.subr.mxu0 0.0
  %1216 = vmatpush1.msra.mxu0 0.0
  %1217 = vmatprep.subr.mxu0 0.0
  %1218 = vmatpush1.msra.mxu0 0.0
  %1219 = vmatprep.mubr.f32.mxu0 0.0
  %1220 = vmatmul.mubr.f32.gmra.mrb[0].mxu0 %v1060
  %v1221 = vpop.f32.mrb[0].mxu0
  %v1222 = vadd.f32 0.0, %v1221
  %v1223 = vpop.f32.mrb[0].mxu0
  %1224 = vmatprep.mubr.f32.mxu0 0.0
  %1225 = vmatmul.mubr.f32.gmra.mrb[0].mxu0 %v1063
  %v1226 = vpop.f32.mrb[0].mxu0
  %v1227 = vadd.f32 0.0, %v1226
  %v1228 = vpop.f32.mrb[0].mxu0
  %1229 = vmatprep.mubr.f32.mxu0 0.0
  %1230 = vmatmul.mubr.f32.gmra.mrb[0].mxu0 %v1066
  %v1231 = vpop.f32.mrb[0].mxu0
  %v1232 = vadd.f32 0.0, %v1231
  %v1233 = vpop.f32.mrb[0].mxu0
  %1234 = vmatprep.mubr.f32.mxu0 0.0
  %1235 = vmatmul.mubr.f32.gmra.mrb[0].mxu0 %v1069
  %v1236 = vpop.f32.mrb[0].mxu0
  %v1237 = vadd.f32 0.0, %v1236
  %v1238 = vpop.f32.mrb[0].mxu0
  %1239 = vmatprep.mubr.f32.mxu0 0.0
  %1240 = vmatmul.mubr.f32.gmra.mrb[0].mxu0 %v1072
  %v1241 = vpop.f32.mrb[0].mxu0
  %v1242 = vadd.f32 0.0, %v1241
  %v1243 = vpop.f32.mrb[0].mxu0
  %1244 = vmatprep.mubr.f32.mxu0 0.0
  %1245 = vmatmul.mubr.f32.gmra.mrb[0].mxu0 %v1075
  %v1246 = vpop.f32.mrb[0].mxu0
  %v1247 = vadd.f32 0.0, %v1246
  %v1248 = vpop.f32.mrb[0].mxu0
  %1249 = vmatprep.mubr.f32.mxu0 0.0
  %1250 = vmatmul.mubr.f32.gmra.mrb[0].mxu0 %v1078
  %v1251 = vpop.f32.mrb[0].mxu0
  %v1252 = vadd.f32 0.0, %v1251
  %v1253 = vpop.f32.mrb[0].mxu0
  %1254 = vmatprep.mubr.f32.mxu0 0.0
  %1255 = vmatmul.mubr.f32.gmra.mrb[0].mxu0 %v1081
  %v1256 = vpop.f32.mrb[0].mxu0
  %v1257 = vadd.f32 0.0, %v1256
  %v1258 = vpop.f32.mrb[0].mxu0
  %1259 = vmatprep.mubr.f32.mxu0 0.0
  %1260 = vmatmul.mubr.f32.gmra.mrb[0].mxu0 %v1084
  %v1261 = vpop.f32.mrb[0].mxu0
  %v1262 = vadd.f32 0.0, %v1261
  %v1263 = vpop.f32.mrb[0].mxu0
  %1264 = vmatprep.mubr.f32.mxu0 0.0
  %1265 = vmatmul.mubr.f32.gmra.mrb[0].mxu0 %v1087
  %v1266 = vpop.f32.mrb[0].mxu0
  %v1267 = vadd.f32 0.0, %v1266
  %v1268 = vpop.f32.mrb[0].mxu0
  %1269 = vmatprep.mubr.f32.mxu0 0.0
  %1270 = vmatmul.mubr.f32.gmra.mrb[0].mxu0 %v1090
  %v1271 = vpop.f32.mrb[0].mxu0
  %v1272 = vadd.f32 0.0, %v1271
  %v1273 = vpop.f32.mrb[0].mxu0
  %1274 = vmatprep.mubr.f32.mxu0 0.0
  %1275 = vmatmul.mubr.f32.gmra.mrb[0].mxu0 %v1093
  %v1276 = vpop.f32.mrb[0].mxu0
  %v1277 = vadd.f32 0.0, %v1276
  %v1278 = vpop.f32.mrb[0].mxu0
  %1279 = vmatprep.mubr.f32.mxu0 0.0
  %1280 = vmatmul.mubr.f32.gmra.mrb[0].mxu0 %v1096
  %v1281 = vpop.f32.mrb[0].mxu0
  %v1282 = vadd.f32 0.0, %v1281
  %v1283 = vpop.f32.mrb[0].mxu0
  %1284 = vmatprep.mubr.f32.mxu0 0.0
  %1285 = vmatmul.mubr.f32.gmra.mrb[0].mxu0 %v1099
  %v1286 = vpop.f32.mrb[0].mxu0
  %v1287 = vadd.f32 0.0, %v1286
  %v1288 = vpop.f32.mrb[0].mxu0
  %1289 = vmatprep.mubr.f32.mxu0 0.0
  %1290 = vmatmul.mubr.f32.gmra.mrb[0].mxu0 %v1102
  %v1291 = vpop.f32.mrb[0].mxu0
  %v1292 = vadd.f32 0.0, %v1291
  %v1293 = vpop.f32.mrb[0].mxu0
  %1294 = vmatprep.mubr.f32.mxu0 0.0
  %1295 = vmatmul.mubr.f32.gmra.mrb[0].mxu0 %v1105
  %v1296 = vpop.f32.mrb[0].mxu0
  %v1297 = vadd.f32 0.0, %v1296
  %v1298 = vpop.f32.mrb[0].mxu0
  %1299 = vmatprep.mubr.f32.mxu0 0.0
  %1300 = vmatmul.mubr.f32.gmra.mrb[0].mxu0 %v1108
  %v1301 = vpop.f32.mrb[0].mxu0
  %v1302 = vadd.f32 0.0, %v1301
  %v1303 = vpop.f32.mrb[0].mxu0
  %1304 = vmatprep.mubr.f32.mxu0 0.0
  %1305 = vmatmul.mubr.f32.gmra.mrb[0].mxu0 %v1111
  %v1306 = vpop.f32.mrb[0].mxu0
  %v1307 = vadd.f32 0.0, %v1306
  %v1308 = vpop.f32.mrb[0].mxu0
  %1309 = vmatprep.mubr.f32.mxu0 0.0
  %1310 = vmatmul.mubr.f32.gmra.mrb[0].mxu0 %v1114
  %v1311 = vpop.f32.mrb[0].mxu0
  %v1312 = vadd.f32 0.0, %v1311
  %v1313 = vpop.f32.mrb[0].mxu0
  %1314 = vmatprep.mubr.f32.mxu0 0.0
  %1315 = vmatmul.mubr.f32.gmra.mrb[0].mxu0 %v1117
  %v1316 = vpop.f32.mrb[0].mxu0
  %v1317 = vadd.f32 0.0, %v1316
  %v1318 = vpop.f32.mrb[0].mxu0
  %1319 = vmatprep.mubr.f32.mxu0 0.0
  %1320 = vmatmul.mubr.f32.gmra.mrb[0].mxu0 %v1120
  %v1321 = vpop.f32.mrb[0].mxu0
  %v1322 = vadd.f32 0.0, %v1321
  %v1323 = vpop.f32.mrb[0].mxu0
  %1324 = vmatprep.mubr.f32.mxu0 0.0
  %1325 = vmatmul.mubr.f32.gmra.mrb[0].mxu0 %v1123
  %v1326 = vpop.f32.mrb[0].mxu0
  %v1327 = vadd.f32 0.0, %v1326
  %v1328 = vpop.f32.mrb[0].mxu0
  %1329 = vmatprep.mubr.f32.mxu0 0.0
  %1330 = vmatmul.mubr.f32.gmra.mrb[0].mxu0 %v1126
  %v1331 = vpop.f32.mrb[0].mxu0
  %v1332 = vadd.f32 0.0, %v1331
  %v1333 = vpop.f32.mrb[0].mxu0
  %1334 = vmatprep.mubr.f32.mxu0 0.0
  %1335 = vmatmul.mubr.f32.gmra.mrb[0].mxu0 %v1129
  %v1336 = vpop.f32.mrb[0].mxu0
  %v1337 = vadd.f32 0.0, %v1336
  %v1338 = vpop.f32.mrb[0].mxu0
  %1339 = vmatprep.mubr.f32.mxu0 0.0
  %1340 = vmatmul.mubr.f32.gmra.mrb[0].mxu0 %v1132
  %v1341 = vpop.f32.mrb[0].mxu0
  %v1342 = vadd.f32 0.0, %v1341
  %v1343 = vpop.f32.mrb[0].mxu0
  %1344 = vmatprep.mubr.f32.mxu0 0.0
  %1345 = vmatmul.mubr.f32.gmra.mrb[0].mxu0 %v1135
  %v1346 = vpop.f32.mrb[0].mxu0
  %v1347 = vadd.f32 0.0, %v1346
  %v1348 = vpop.f32.mrb[0].mxu0
  %1349 = vmatprep.mubr.f32.mxu0 0.0
  %1350 = vmatmul.mubr.f32.gmra.mrb[0].mxu0 %v1138
  %v1351 = vpop.f32.mrb[0].mxu0
  %v1352 = vadd.f32 0.0, %v1351
  %v1353 = vpop.f32.mrb[0].mxu0
  %1354 = vmatprep.mubr.f32.mxu0 0.0
  %1355 = vmatmul.mubr.f32.gmra.mrb[0].mxu0 %v1141
  %v1356 = vpop.f32.mrb[0].mxu0
  %v1357 = vadd.f32 0.0, %v1356
  %v1358 = vpop.f32.mrb[0].mxu0
  %1359 = vmatprep.mubr.f32.mxu0 0.0
  %1360 = vmatmul.mubr.f32.gmra.mrb[0].mxu0 %v1144
  %v1361 = vpop.f32.mrb[0].mxu0
  %v1362 = vadd.f32 0.0, %v1361
  %v1363 = vpop.f32.mrb[0].mxu0
  %1364 = vmatprep.mubr.f32.mxu0 0.0
  %1365 = vmatmul.mubr.f32.gmra.mrb[0].mxu0 %v1147
  %v1366 = vpop.f32.mrb[0].mxu0
  %v1367 = vadd.f32 0.0, %v1366
  %v1368 = vpop.f32.mrb[0].mxu0
  %1369 = vmatprep.mubr.f32.mxu0 0.0
  %1370 = vmatmul.mubr.f32.gmra.mrb[0].mxu0 %v1150
  %v1371 = vpop.f32.mrb[0].mxu0
  %v1372 = vadd.f32 0.0, %v1371
  %v1373 = vpop.f32.mrb[0].mxu0
  %1374 = vmatprep.mubr.f32.mxu0 0.0
  %1375 = vmatmul.mubr.f32.gmra.mrb[0].mxu0 %v1153
  %v1376 = vpop.f32.mrb[0].mxu0
  %v1377 = vadd.f32 0.0, %v1376
  %v1378 = vpop.f32.mrb[0].mxu0
  %1379 = vdwg.mxu0
  %1412 = vrot.lane.b32.xlu0 %v869, 96
  %v1413 = vpop.permute.xlu0 %1412
  %1414 = vrot.lane.b32.xlu0 %v874, 96
  %v1415 = vpop.permute.xlu0 %1414
  %1416 = vrot.lane.b32.xlu0 %v879, 96
  %v1417 = vpop.permute.xlu0 %1416
  %1418 = vrot.lane.b32.xlu0 %v884, 96
  %v1419 = vpop.permute.xlu0 %1418
  %1420 = vrot.lane.b32.xlu0 %v889, 96
  %v1421 = vpop.permute.xlu0 %1420
  %1422 = vrot.lane.b32.xlu0 %v894, 96
  %v1423 = vpop.permute.xlu0 %1422
  %1424 = vrot.lane.b32.xlu0 %v899, 96
  %v1425 = vpop.permute.xlu0 %1424
  %1426 = vrot.lane.b32.xlu0 %v904, 96
  %v1427 = vpop.permute.xlu0 %1426
  %1428 = vrot.lane.b32.xlu0 %v909, 96
  %v1429 = vpop.permute.xlu0 %1428
  %1430 = vrot.lane.b32.xlu0 %v914, 96
  %v1431 = vpop.permute.xlu0 %1430
  %1432 = vrot.lane.b32.xlu0 %v919, 96
  %v1433 = vpop.permute.xlu0 %1432
  %1434 = vrot.lane.b32.xlu0 %v924, 96
  %v1435 = vpop.permute.xlu0 %1434
  %1436 = vrot.lane.b32.xlu0 %v929, 96
  %v1437 = vpop.permute.xlu0 %1436
  %1438 = vrot.lane.b32.xlu0 %v934, 96
  %v1439 = vpop.permute.xlu0 %1438
  %1440 = vrot.lane.b32.xlu0 %v939, 96
  %v1441 = vpop.permute.xlu0 %1440
  %1442 = vrot.lane.b32.xlu0 %v944, 96
  %v1443 = vpop.permute.xlu0 %1442
  %1444 = vrot.lane.b32.xlu0 %v949, 96
  %v1445 = vpop.permute.xlu0 %1444
  %1446 = vrot.lane.b32.xlu0 %v954, 96
  %v1447 = vpop.permute.xlu0 %1446
  %1448 = vrot.lane.b32.xlu0 %v959, 96
  %v1449 = vpop.permute.xlu0 %1448
  %1450 = vrot.lane.b32.xlu0 %v964, 96
  %v1451 = vpop.permute.xlu0 %1450
  %1452 = vrot.lane.b32.xlu0 %v969, 96
  %v1453 = vpop.permute.xlu0 %1452
  %1454 = vrot.lane.b32.xlu0 %v974, 96
  %v1455 = vpop.permute.xlu0 %1454
  %1456 = vrot.lane.b32.xlu0 %v979, 96
  %v1457 = vpop.permute.xlu0 %1456
  %1458 = vrot.lane.b32.xlu0 %v984, 96
  %v1459 = vpop.permute.xlu0 %1458
  %1460 = vrot.lane.b32.xlu0 %v989, 96
  %v1461 = vpop.permute.xlu0 %1460
  %1462 = vrot.lane.b32.xlu0 %v994, 96
  %v1463 = vpop.permute.xlu0 %1462
  %1464 = vrot.lane.b32.xlu0 %v999, 96
  %v1465 = vpop.permute.xlu0 %1464
  %1466 = vrot.lane.b32.xlu0 %v1004, 96
  %v1467 = vpop.permute.xlu0 %1466
  %1468 = vrot.lane.b32.xlu0 %v1009, 96
  %v1469 = vpop.permute.xlu0 %1468
  %1470 = vrot.lane.b32.xlu0 %v1014, 96
  %v1471 = vpop.permute.xlu0 %1470
  %1472 = vrot.lane.b32.xlu0 %v1019, 96
  %v1473 = vpop.permute.xlu0 %1472
  %1474 = vrot.lane.b32.xlu0 %v1024, 96
  %v1475 = vpop.permute.xlu0 %1474
  %v1508 = vadd.f32 %v547, %v1413
  %v1509 = vadd.f32 %v552, %v1415
  %v1510 = vadd.f32 %v557, %v1417
  %v1511 = vadd.f32 %v562, %v1419
  %v1512 = vadd.f32 %v567, %v1421
  %v1513 = vadd.f32 %v572, %v1423
  %v1514 = vadd.f32 %v577, %v1425
  %v1515 = vadd.f32 %v582, %v1427
  %v1516 = vadd.f32 %v587, %v1429
  %v1517 = vadd.f32 %v592, %v1431
  %v1518 = vadd.f32 %v597, %v1433
  %v1519 = vadd.f32 %v602, %v1435
  %v1520 = vadd.f32 %v607, %v1437
  %v1521 = vadd.f32 %v612, %v1439
  %v1522 = vadd.f32 %v617, %v1441
  %v1523 = vadd.f32 %v622, %v1443
  %v1524 = vadd.f32 %v627, %v1445
  %v1525 = vadd.f32 %v632, %v1447
  %v1526 = vadd.f32 %v637, %v1449
  %v1527 = vadd.f32 %v642, %v1451
  %v1528 = vadd.f32 %v647, %v1453
  %v1529 = vadd.f32 %v652, %v1455
  %v1530 = vadd.f32 %v657, %v1457
  %v1531 = vadd.f32 %v662, %v1459
  %v1532 = vadd.f32 %v667, %v1461
  %v1533 = vadd.f32 %v672, %v1463
  %v1534 = vadd.f32 %v677, %v1465
  %v1535 = vadd.f32 %v682, %v1467
  %v1536 = vadd.f32 %v687, %v1469
  %v1537 = vadd.f32 %v692, %v1471
  %v1538 = vadd.f32 %v697, %v1473
  %v1539 = vadd.f32 %v702, %v1475
  %v1540 = vadd.f32 %v1508, %v1222
  %v1541 = vadd.f32 %v1509, %v1227
  %v1542 = vadd.f32 %v1510, %v1232
  %v1543 = vadd.f32 %v1511, %v1237
  %v1544 = vadd.f32 %v1512, %v1242
  %v1545 = vadd.f32 %v1513, %v1247
  %v1546 = vadd.f32 %v1514, %v1252
  %v1547 = vadd.f32 %v1515, %v1257
  %v1548 = vadd.f32 %v1516, %v1262
  %v1549 = vadd.f32 %v1517, %v1267
  %v1550 = vadd.f32 %v1518, %v1272
  %v1551 = vadd.f32 %v1519, %v1277
  %v1552 = vadd.f32 %v1520, %v1282
  %v1553 = vadd.f32 %v1521, %v1287
  %v1554 = vadd.f32 %v1522, %v1292
  %v1555 = vadd.f32 %v1523, %v1297
  %v1556 = vadd.f32 %v1524, %v1302
  %v1557 = vadd.f32 %v1525, %v1307
  %v1558 = vadd.f32 %v1526, %v1312
  %v1559 = vadd.f32 %v1527, %v1317
  %v1560 = vadd.f32 %v1528, %v1322
  %v1561 = vadd.f32 %v1529, %v1327
  %v1562 = vadd.f32 %v1530, %v1332
  %v1563 = vadd.f32 %v1531, %v1337
  %v1564 = vadd.f32 %v1532, %v1342
  %v1565 = vadd.f32 %v1533, %v1347
  %v1566 = vadd.f32 %v1534, %v1352
  %v1567 = vadd.f32 %v1535, %v1357
  %v1568 = vadd.f32 %v1536, %v1362
  %v1569 = vadd.f32 %v1537, %v1367
  %v1570 = vadd.f32 %v1538, %v1372
  %v1571 = vadd.f32 %v1539, %v1377
  %v1572 = vxor.u32 %v1540, 2147483648
  %v1573 = vxor.u32 %v1541, 2147483648
  %v1574 = vxor.u32 %v1542, 2147483648
  %v1575 = vxor.u32 %v1543, 2147483648
  %v1576 = vxor.u32 %v1544, 2147483648
  %v1577 = vxor.u32 %v1545, 2147483648
  %v1578 = vxor.u32 %v1546, 2147483648
  %v1579 = vxor.u32 %v1547, 2147483648
  %v1580 = vxor.u32 %v1548, 2147483648
  %v1581 = vxor.u32 %v1549, 2147483648
  %v1582 = vxor.u32 %v1550, 2147483648
  %v1583 = vxor.u32 %v1551, 2147483648
  %v1584 = vxor.u32 %v1552, 2147483648
  %v1585 = vxor.u32 %v1553, 2147483648
  %v1586 = vxor.u32 %v1554, 2147483648
  %v1587 = vxor.u32 %v1555, 2147483648
  %v1588 = vxor.u32 %v1556, 2147483648
  %v1589 = vxor.u32 %v1557, 2147483648
  %v1590 = vxor.u32 %v1558, 2147483648
  %v1591 = vxor.u32 %v1559, 2147483648
  %v1592 = vxor.u32 %v1560, 2147483648
  %v1593 = vxor.u32 %v1561, 2147483648
  %v1594 = vxor.u32 %v1562, 2147483648
  %v1595 = vxor.u32 %v1563, 2147483648
  %v1596 = vxor.u32 %v1564, 2147483648
  %v1597 = vxor.u32 %v1565, 2147483648
  %v1598 = vxor.u32 %v1566, 2147483648
  %v1599 = vxor.u32 %v1567, 2147483648
  %v1600 = vxor.u32 %v1568, 2147483648
  %v1601 = vxor.u32 %v1569, 2147483648
  %v1602 = vxor.u32 %v1570, 2147483648
  %v1603 = vxor.u32 %v1571, 2147483648
  %v1604 = vmul.f32 %v1572, 1.442695
  %v1605 = vpow.pop %v1604
  %v1606 = vmul.f32 %v1573, 1.442695
  %v1607 = vpow.pop %v1606
  %v1608 = vmul.f32 %v1574, 1.442695
  %v1609 = vpow.pop %v1608
  %v1610 = vmul.f32 %v1575, 1.442695
  %v1611 = vpow.pop %v1610
  %v1612 = vmul.f32 %v1576, 1.442695
  %v1613 = vpow.pop %v1612
  %v1614 = vmul.f32 %v1577, 1.442695
  %v1615 = vpow.pop %v1614
  %v1616 = vmul.f32 %v1578, 1.442695
  %v1617 = vpow.pop %v1616
  %v1618 = vmul.f32 %v1579, 1.442695
  %v1619 = vpow.pop %v1618
  %v1620 = vmul.f32 %v1580, 1.442695
  %v1621 = vpow.pop %v1620
  %v1622 = vmul.f32 %v1581, 1.442695
  %v1623 = vpow.pop %v1622
  %v1624 = vmul.f32 %v1582, 1.442695
  %v1625 = vpow.pop %v1624
  %v1626 = vmul.f32 %v1583, 1.442695
  %v1627 = vpow.pop %v1626
  %v1628 = vmul.f32 %v1584, 1.442695
  %v1629 = vpow.pop %v1628
  %v1630 = vmul.f32 %v1585, 1.442695
  %v1631 = vpow.pop %v1630
  %v1632 = vmul.f32 %v1586, 1.442695
  %v1633 = vpow.pop %v1632
  %v1634 = vmul.f32 %v1587, 1.442695
  %v1635 = vpow.pop %v1634
  %v1636 = vmul.f32 %v1588, 1.442695
  %v1637 = vpow.pop %v1636
  %v1638 = vmul.f32 %v1589, 1.442695
  %v1639 = vpow.pop %v1638
  %v1640 = vmul.f32 %v1590, 1.442695
  %v1641 = vpow.pop %v1640
  %v1642 = vmul.f32 %v1591, 1.442695
  %v1643 = vpow.pop %v1642
  %v1644 = vmul.f32 %v1592, 1.442695
  %v1645 = vpow.pop %v1644
  %v1646 = vmul.f32 %v1593, 1.442695
  %v1647 = vpow.pop %v1646
  %v1648 = vmul.f32 %v1594, 1.442695
  %v1649 = vpow.pop %v1648
  %v1650 = vmul.f32 %v1595, 1.442695
  %v1651 = vpow.pop %v1650
  %v1652 = vmul.f32 %v1596, 1.442695
  %v1653 = vpow.pop %v1652
  %v1654 = vmul.f32 %v1597, 1.442695
  %v1655 = vpow.pop %v1654
  %v1656 = vmul.f32 %v1598, 1.442695
  %v1657 = vpow.pop %v1656
  %v1658 = vmul.f32 %v1599, 1.442695
  %v1659 = vpow.pop %v1658
  %v1660 = vmul.f32 %v1600, 1.442695
  %v1661 = vpow.pop %v1660
  %v1662 = vmul.f32 %v1601, 1.442695
  %v1663 = vpow.pop %v1662
  %v1664 = vmul.f32 %v1602, 1.442695
  %v1665 = vpow.pop %v1664
  %v1666 = vmul.f32 %v1603, 1.442695
  %v1667 = vpow.pop %v1666
  %v1668 = vadd.f32 %v1605, 1.0
  %v1669 = vadd.f32 %v1607, 1.0
  %v1670 = vadd.f32 %v1609, 1.0
  %v1671 = vadd.f32 %v1611, 1.0
  %v1672 = vadd.f32 %v1613, 1.0
  %v1673 = vadd.f32 %v1615, 1.0
  %v1674 = vadd.f32 %v1617, 1.0
  %v1675 = vadd.f32 %v1619, 1.0
  %v1676 = vadd.f32 %v1621, 1.0
  %v1677 = vadd.f32 %v1623, 1.0
  %v1678 = vadd.f32 %v1625, 1.0
  %v1679 = vadd.f32 %v1627, 1.0
  %v1680 = vadd.f32 %v1629, 1.0
  %v1681 = vadd.f32 %v1631, 1.0
  %v1682 = vadd.f32 %v1633, 1.0
  %v1683 = vadd.f32 %v1635, 1.0
  %v1684 = vadd.f32 %v1637, 1.0
  %v1685 = vadd.f32 %v1639, 1.0
  %v1686 = vadd.f32 %v1641, 1.0
  %v1687 = vadd.f32 %v1643, 1.0
  %v1688 = vadd.f32 %v1645, 1.0
  %v1689 = vadd.f32 %v1647, 1.0
  %v1690 = vadd.f32 %v1649, 1.0
  %v1691 = vadd.f32 %v1651, 1.0
  %v1692 = vadd.f32 %v1653, 1.0
  %v1693 = vadd.f32 %v1655, 1.0
  %v1694 = vadd.f32 %v1657, 1.0
  %v1695 = vadd.f32 %v1659, 1.0
  %v1696 = vadd.f32 %v1661, 1.0
  %v1697 = vadd.f32 %v1663, 1.0
  %v1698 = vadd.f32 %v1665, 1.0
  %v1699 = vadd.f32 %v1667, 1.0
  %v1700 = vrcp.pop %v1668
  %v1701 = vmul.f32 1.0, %v1700
  %v1702 = vrcp.pop %v1669
  %v1703 = vmul.f32 1.0, %v1702
  %v1704 = vrcp.pop %v1670
  %v1705 = vmul.f32 1.0, %v1704
  %v1706 = vrcp.pop %v1671
  %v1707 = vmul.f32 1.0, %v1706
  %v1708 = vrcp.pop %v1672
  %v1709 = vmul.f32 1.0, %v1708
  %v1710 = vrcp.pop %v1673
  %v1711 = vmul.f32 1.0, %v1710
  %v1712 = vrcp.pop %v1674
  %v1713 = vmul.f32 1.0, %v1712
  %v1714 = vrcp.pop %v1675
  %v1715 = vmul.f32 1.0, %v1714
  %v1716 = vrcp.pop %v1676
  %v1717 = vmul.f32 1.0, %v1716
  %v1718 = vrcp.pop %v1677
  %v1719 = vmul.f32 1.0, %v1718
  %v1720 = vrcp.pop %v1678
  %v1721 = vmul.f32 1.0, %v1720
  %v1722 = vrcp.pop %v1679
  %v1723 = vmul.f32 1.0, %v1722
  %v1724 = vrcp.pop %v1680
  %v1725 = vmul.f32 1.0, %v1724
  %v1726 = vrcp.pop %v1681
  %v1727 = vmul.f32 1.0, %v1726
  %v1728 = vrcp.pop %v1682
  %v1729 = vmul.f32 1.0, %v1728
  %v1730 = vrcp.pop %v1683
  %v1731 = vmul.f32 1.0, %v1730
  %v1732 = vrcp.pop %v1684
  %v1733 = vmul.f32 1.0, %v1732
  %v1734 = vrcp.pop %v1685
  %v1735 = vmul.f32 1.0, %v1734
  %v1736 = vrcp.pop %v1686
  %v1737 = vmul.f32 1.0, %v1736
  %v1738 = vrcp.pop %v1687
  %v1739 = vmul.f32 1.0, %v1738
  %v1740 = vrcp.pop %v1688
  %v1741 = vmul.f32 1.0, %v1740
  %v1742 = vrcp.pop %v1689
  %v1743 = vmul.f32 1.0, %v1742
  %v1744 = vrcp.pop %v1690
  %v1745 = vmul.f32 1.0, %v1744
  %v1746 = vrcp.pop %v1691
  %v1747 = vmul.f32 1.0, %v1746
  %v1748 = vrcp.pop %v1692
  %v1749 = vmul.f32 1.0, %v1748
  %v1750 = vrcp.pop %v1693
  %v1751 = vmul.f32 1.0, %v1750
  %v1752 = vrcp.pop %v1694
  %v1753 = vmul.f32 1.0, %v1752
  %v1754 = vrcp.pop %v1695
  %v1755 = vmul.f32 1.0, %v1754
  %v1756 = vrcp.pop %v1696
  %v1757 = vmul.f32 1.0, %v1756
  %v1758 = vrcp.pop %v1697
  %v1759 = vmul.f32 1.0, %v1758
  %v1760 = vrcp.pop %v1698
  %v1761 = vmul.f32 1.0, %v1760
  %v1762 = vrcp.pop %v1699
  %v1763 = vmul.f32 1.0, %v1762
  %v1764 = vmul.f32 %v1701, %v869
  %v1765 = vmul.f32 %v1703, %v874
  %v1766 = vmul.f32 %v1705, %v879
  %v1767 = vmul.f32 %v1707, %v884
  %v1768 = vmul.f32 %v1709, %v889
  %v1769 = vmul.f32 %v1711, %v894
  %v1770 = vmul.f32 %v1713, %v899
  %v1771 = vmul.f32 %v1715, %v904
  %v1772 = vmul.f32 %v1717, %v909
  %v1773 = vmul.f32 %v1719, %v914
  %v1774 = vmul.f32 %v1721, %v919
  %v1775 = vmul.f32 %v1723, %v924
  %v1776 = vmul.f32 %v1725, %v929
  %v1777 = vmul.f32 %v1727, %v934
  %v1778 = vmul.f32 %v1729, %v939
  %v1779 = vmul.f32 %v1731, %v944
  %v1780 = vmul.f32 %v1733, %v949
  %v1781 = vmul.f32 %v1735, %v954
  %v1782 = vmul.f32 %v1737, %v959
  %v1783 = vmul.f32 %v1739, %v964
  %v1784 = vmul.f32 %v1741, %v969
  %v1785 = vmul.f32 %v1743, %v974
  %v1786 = vmul.f32 %v1745, %v979
  %v1787 = vmul.f32 %v1747, %v984
  %v1788 = vmul.f32 %v1749, %v989
  %v1789 = vmul.f32 %v1751, %v994
  %v1790 = vmul.f32 %v1753, %v999
  %v1791 = vmul.f32 %v1755, %v1004
  %v1792 = vmul.f32 %v1757, %v1009
  %v1793 = vmul.f32 %v1759, %v1014
  %v1794 = vmul.f32 %v1761, %v1019
  %v1795 = vmul.f32 %v1763, %v1024
  %1828 = vrot.lane.b32.xlu0 %v1701, 32
  %v1829 = vpop.permute.xlu0 %1828
  %1830 = vrot.lane.b32.xlu0 %v1703, 32
  %v1831 = vpop.permute.xlu0 %1830
  %1832 = vrot.lane.b32.xlu0 %v1705, 32
  %v1833 = vpop.permute.xlu0 %1832
  %1834 = vrot.lane.b32.xlu0 %v1707, 32
  %v1835 = vpop.permute.xlu0 %1834
  %1836 = vrot.lane.b32.xlu0 %v1709, 32
  %v1837 = vpop.permute.xlu0 %1836
  %1838 = vrot.lane.b32.xlu0 %v1711, 32
  %v1839 = vpop.permute.xlu0 %1838
  %1840 = vrot.lane.b32.xlu0 %v1713, 32
  %v1841 = vpop.permute.xlu0 %1840
  %1842 = vrot.lane.b32.xlu0 %v1715, 32
  %v1843 = vpop.permute.xlu0 %1842
  %1844 = vrot.lane.b32.xlu0 %v1717, 32
  %v1845 = vpop.permute.xlu0 %1844
  %1846 = vrot.lane.b32.xlu0 %v1719, 32
  %v1847 = vpop.permute.xlu0 %1846
  %1848 = vrot.lane.b32.xlu0 %v1721, 32
  %v1849 = vpop.permute.xlu0 %1848
  %1850 = vrot.lane.b32.xlu0 %v1723, 32
  %v1851 = vpop.permute.xlu0 %1850
  %1852 = vrot.lane.b32.xlu0 %v1725, 32
  %v1853 = vpop.permute.xlu0 %1852
  %1854 = vrot.lane.b32.xlu0 %v1727, 32
  %v1855 = vpop.permute.xlu0 %1854
  %1856 = vrot.lane.b32.xlu0 %v1729, 32
  %v1857 = vpop.permute.xlu0 %1856
  %1858 = vrot.lane.b32.xlu0 %v1731, 32
  %v1859 = vpop.permute.xlu0 %1858
  %1860 = vrot.lane.b32.xlu0 %v1733, 32
  %v1861 = vpop.permute.xlu0 %1860
  %1862 = vrot.lane.b32.xlu0 %v1735, 32
  %v1863 = vpop.permute.xlu0 %1862
  %1864 = vrot.lane.b32.xlu0 %v1737, 32
  %v1865 = vpop.permute.xlu0 %1864
  %1866 = vrot.lane.b32.xlu0 %v1739, 32
  %v1867 = vpop.permute.xlu0 %1866
  %1868 = vrot.lane.b32.xlu0 %v1741, 32
  %v1869 = vpop.permute.xlu0 %1868
  %1870 = vrot.lane.b32.xlu0 %v1743, 32
  %v1871 = vpop.permute.xlu0 %1870
  %1872 = vrot.lane.b32.xlu0 %v1745, 32
  %v1873 = vpop.permute.xlu0 %1872
  %1874 = vrot.lane.b32.xlu0 %v1747, 32
  %v1875 = vpop.permute.xlu0 %1874
  %1876 = vrot.lane.b32.xlu0 %v1749, 32
  %v1877 = vpop.permute.xlu0 %1876
  %1878 = vrot.lane.b32.xlu0 %v1751, 32
  %v1879 = vpop.permute.xlu0 %1878
  %1880 = vrot.lane.b32.xlu0 %v1753, 32
  %v1881 = vpop.permute.xlu0 %1880
  %1882 = vrot.lane.b32.xlu0 %v1755, 32
  %v1883 = vpop.permute.xlu0 %1882
  %1884 = vrot.lane.b32.xlu0 %v1757, 32
  %v1885 = vpop.permute.xlu0 %1884
  %1886 = vrot.lane.b32.xlu0 %v1759, 32
  %v1887 = vpop.permute.xlu0 %1886
  %1888 = vrot.lane.b32.xlu0 %v1761, 32
  %v1889 = vpop.permute.xlu0 %1888
  %1890 = vrot.lane.b32.xlu0 %v1763, 32
  %v1891 = vpop.permute.xlu0 %1890
  %v1924 = vsel %vm243, %v1764, %v1829
  %v1925 = vsel %vm243, %v1765, %v1831
  %v1926 = vsel %vm243, %v1766, %v1833
  %v1927 = vsel %vm243, %v1767, %v1835
  %v1928 = vsel %vm243, %v1768, %v1837
  %v1929 = vsel %vm243, %v1769, %v1839
  %v1930 = vsel %vm243, %v1770, %v1841
  %v1931 = vsel %vm243, %v1771, %v1843
  %v1932 = vsel %vm243, %v1772, %v1845
  %v1933 = vsel %vm243, %v1773, %v1847
  %v1934 = vsel %vm243, %v1774, %v1849
  %v1935 = vsel %vm243, %v1775, %v1851
  %v1936 = vsel %vm243, %v1776, %v1853
  %v1937 = vsel %vm243, %v1777, %v1855
  %v1938 = vsel %vm243, %v1778, %v1857
  %v1939 = vsel %vm243, %v1779, %v1859
  %v1940 = vsel %vm243, %v1780, %v1861
  %v1941 = vsel %vm243, %v1781, %v1863
  %v1942 = vsel %vm243, %v1782, %v1865
  %v1943 = vsel %vm243, %v1783, %v1867
  %v1944 = vsel %vm243, %v1784, %v1869
  %v1945 = vsel %vm243, %v1785, %v1871
  %v1946 = vsel %vm243, %v1786, %v1873
  %v1947 = vsel %vm243, %v1787, %v1875
  %v1948 = vsel %vm243, %v1788, %v1877
  %v1949 = vsel %vm243, %v1789, %v1879
  %v1950 = vsel %vm243, %v1790, %v1881
  %v1951 = vsel %vm243, %v1791, %v1883
  %v1952 = vsel %vm243, %v1792, %v1885
  %v1953 = vsel %vm243, %v1793, %v1887
  %v1954 = vsel %vm243, %v1794, %v1889
  %v1955 = vsel %vm243, %v1795, %v1891
  %1956 = vmatprep.subr.mxu0 0.0
  %1957 = vmatpush1.msra.mxu0 %v1924
  %1958 = vmatprep.subr.mxu0 0.0
  %1959 = vmatpush1.msra.mxu0 %v1925
  %1960 = vmatprep.subr.mxu0 0.0
  %1961 = vmatpush1.msra.mxu0 %v1926
  %1962 = vmatprep.subr.mxu0 0.0
  %1963 = vmatpush1.msra.mxu0 %v1927
  %1964 = vmatprep.subr.mxu0 0.0
  %1965 = vmatpush1.msra.mxu0 %v1928
  %1966 = vmatprep.subr.mxu0 0.0
  %1967 = vmatpush1.msra.mxu0 %v1929
  %1968 = vmatprep.subr.mxu0 0.0
  %1969 = vmatpush1.msra.mxu0 %v1930
  %1970 = vmatprep.subr.mxu0 0.0
  %1971 = vmatpush1.msra.mxu0 %v1931
  %1972 = vmatprep.subr.mxu0 0.0
  %1973 = vmatpush1.msra.mxu0 %v1932
  %1974 = vmatprep.subr.mxu0 0.0
  %1975 = vmatpush1.msra.mxu0 %v1933
  %1976 = vmatprep.subr.mxu0 0.0
  %1977 = vmatpush1.msra.mxu0 %v1934
  %1978 = vmatprep.subr.mxu0 0.0
  %1979 = vmatpush1.msra.mxu0 %v1935
  %1980 = vmatprep.subr.mxu0 0.0
  %1981 = vmatpush1.msra.mxu0 %v1936
  %1982 = vmatprep.subr.mxu0 0.0
  %1983 = vmatpush1.msra.mxu0 %v1937
  %1984 = vmatprep.subr.mxu0 0.0
  %1985 = vmatpush1.msra.mxu0 %v1938
  %1986 = vmatprep.subr.mxu0 0.0
  %1987 = vmatpush1.msra.mxu0 %v1939
  %1988 = vmatprep.subr.mxu0 0.0
  %1989 = vmatpush1.msra.mxu0 %v1940
  %1990 = vmatprep.subr.mxu0 0.0
  %1991 = vmatpush1.msra.mxu0 %v1941
  %1992 = vmatprep.subr.mxu0 0.0
  %1993 = vmatpush1.msra.mxu0 %v1942
  %1994 = vmatprep.subr.mxu0 0.0
  %1995 = vmatpush1.msra.mxu0 %v1943
  %1996 = vmatprep.subr.mxu0 0.0
  %1997 = vmatpush1.msra.mxu0 %v1944
  %1998 = vmatprep.subr.mxu0 0.0
  %1999 = vmatpush1.msra.mxu0 %v1945
  %2000 = vmatprep.subr.mxu0 0.0
  %2001 = vmatpush1.msra.mxu0 %v1946
  %2002 = vmatprep.subr.mxu0 0.0
  %2003 = vmatpush1.msra.mxu0 %v1947
  %2004 = vmatprep.subr.mxu0 0.0
  %2005 = vmatpush1.msra.mxu0 %v1948
  %2006 = vmatprep.subr.mxu0 0.0
  %2007 = vmatpush1.msra.mxu0 %v1949
  %2008 = vmatprep.subr.mxu0 0.0
  %2009 = vmatpush1.msra.mxu0 %v1950
  %2010 = vmatprep.subr.mxu0 0.0
  %2011 = vmatpush1.msra.mxu0 %v1951
  %2012 = vmatprep.subr.mxu0 0.0
  %2013 = vmatpush1.msra.mxu0 %v1952
  %2014 = vmatprep.subr.mxu0 0.0
  %2015 = vmatpush1.msra.mxu0 %v1953
  %2016 = vmatprep.subr.mxu0 0.0
  %2017 = vmatpush1.msra.mxu0 %v1954
  %2018 = vmatprep.subr.mxu0 0.0
  %2019 = vmatpush1.msra.mxu0 %v1955
  %2020 = vmatprep.mubr.f32.mxu0 %v217
  %2021 = vmatmul.mubr.f32.gmra.mrb[0].mxu0 %v216
  %v2022 = vpop.f32.mrb[0].mxu0
  %v2023 = vadd.f32 0.0, %v2022
  %v2024 = vpop.f32.mrb[0].mxu0
  %2025 = vmatprep.mubr.f32.mxu0 %v219
  %2026 = vmatmul.mubr.f32.gmra.mrb[0].mxu0 %v218
  %v2027 = vpop.f32.mrb[0].mxu0
  %v2028 = vadd.f32 0.0, %v2027
  %v2029 = vpop.f32.mrb[0].mxu0
  %2030 = vmatprep.mubr.f32.mxu0 %v221
  %2031 = vmatmul.mubr.f32.gmra.mrb[0].mxu0 %v220
  %v2032 = vpop.f32.mrb[0].mxu0
  %v2033 = vadd.f32 0.0, %v2032
  %v2034 = vpop.f32.mrb[0].mxu0
  %2035 = vmatprep.mubr.f32.mxu0 %v223
  %2036 = vmatmul.mubr.f32.gmra.mrb[0].mxu0 %v222
  %v2037 = vpop.f32.mrb[0].mxu0
  %v2038 = vadd.f32 0.0, %v2037
  %v2039 = vpop.f32.mrb[0].mxu0
  %2040 = vmatprep.mubr.f32.mxu0 %v225
  %2041 = vmatmul.mubr.f32.gmra.mrb[0].mxu0 %v224
  %v2042 = vpop.f32.mrb[0].mxu0
  %v2043 = vadd.f32 0.0, %v2042
  %v2044 = vpop.f32.mrb[0].mxu0
  %2045 = vmatprep.mubr.f32.mxu0 %v227
  %2046 = vmatmul.mubr.f32.gmra.mrb[0].mxu0 %v226
  %v2047 = vpop.f32.mrb[0].mxu0
  %v2048 = vadd.f32 0.0, %v2047
  %v2049 = vpop.f32.mrb[0].mxu0
  %2050 = vmatprep.mubr.f32.mxu0 %v229
  %2051 = vmatmul.mubr.f32.gmra.mrb[0].mxu0 %v228
  %v2052 = vpop.f32.mrb[0].mxu0
  %v2053 = vadd.f32 0.0, %v2052
  %v2054 = vpop.f32.mrb[0].mxu0
  %2055 = vmatprep.mubr.f32.mxu0 %v231
  %2056 = vmatmul.mubr.f32.gmra.mrb[0].mxu0 %v230
  %v2057 = vpop.f32.mrb[0].mxu0
  %v2058 = vadd.f32 0.0, %v2057
  %v2059 = vpop.f32.mrb[0].mxu0
  %2060 = vdwg.mxu0
  %v2061 = vadd.f32 %v2023, 1e-06
  %v2062 = vadd.f32 %v2028, 1e-06
  %v2063 = vadd.f32 %v2033, 1e-06
  %v2064 = vadd.f32 %v2038, 1e-06
  %v2065 = vadd.f32 %v2043, 1e-06
  %v2066 = vadd.f32 %v2048, 1e-06
  %v2067 = vadd.f32 %v2053, 1e-06
  %v2068 = vadd.f32 %v2058, 1e-06
  %v2069 = vrcp.pop %v2061
  %v2070 = vrcp.pop %v2062
  %v2071 = vrcp.pop %v2063
  %v2072 = vrcp.pop %v2064
  %v2073 = vrcp.pop %v2065
  %v2074 = vrcp.pop %v2066
  %v2075 = vrcp.pop %v2067
  %v2076 = vrcp.pop %v2068
  %2085 = vrot.lane.b32.xlu0 %v2069, 96
  %v2086 = vpop.permute.xlu0 %2085
  %2087 = vrot.lane.b32.xlu0 %v2070, 96
  %v2088 = vpop.permute.xlu0 %2087
  %2089 = vrot.lane.b32.xlu0 %v2071, 96
  %v2090 = vpop.permute.xlu0 %2089
  %2091 = vrot.lane.b32.xlu0 %v2072, 96
  %v2092 = vpop.permute.xlu0 %2091
  %2093 = vrot.lane.b32.xlu0 %v2073, 96
  %v2094 = vpop.permute.xlu0 %2093
  %2095 = vrot.lane.b32.xlu0 %v2074, 96
  %v2096 = vpop.permute.xlu0 %2095
  %2097 = vrot.lane.b32.xlu0 %v2075, 96
  %v2098 = vpop.permute.xlu0 %2097
  %2099 = vrot.lane.b32.xlu0 %v2076, 96
  %v2100 = vpop.permute.xlu0 %2099
  %v2109 = vmul.f32 %v2023, %v2086
  %v2110 = vmul.f32 %v2028, %v2088
  %v2111 = vmul.f32 %v2033, %v2090
  %v2112 = vmul.f32 %v2038, %v2092
  %v2113 = vmul.f32 %v2043, %v2094
  %v2114 = vmul.f32 %v2048, %v2096
  %v2115 = vmul.f32 %v2053, %v2098
  %v2116 = vmul.f32 %v2058, %v2100
  %2125 = vrot.lane.b32.xlu0 %v2109, 96
  %v2126 = vpop.permute.xlu0 %2125
  %2127 = vrot.lane.b32.xlu0 %v2110, 96
  %v2128 = vpop.permute.xlu0 %2127
  %2129 = vrot.lane.b32.xlu0 %v2111, 96
  %v2130 = vpop.permute.xlu0 %2129
  %2131 = vrot.lane.b32.xlu0 %v2112, 96
  %v2132 = vpop.permute.xlu0 %2131
  %2133 = vrot.lane.b32.xlu0 %v2113, 96
  %v2134 = vpop.permute.xlu0 %2133
  %2135 = vrot.lane.b32.xlu0 %v2114, 96
  %v2136 = vpop.permute.xlu0 %2135
  %2137 = vrot.lane.b32.xlu0 %v2115, 96
  %v2138 = vpop.permute.xlu0 %2137
  %2139 = vrot.lane.b32.xlu0 %v2116, 96
  %v2140 = vpop.permute.xlu0 %2139
  %v2149 = vadd.f32 %v335, %v2126
  %v2150 = vadd.f32 %v340, %v2128
  %v2151 = vadd.f32 %v345, %v2130
  %v2152 = vadd.f32 %v350, %v2132
  %v2153 = vadd.f32 %v355, %v2134
  %v2154 = vadd.f32 %v360, %v2136
  %v2155 = vadd.f32 %v365, %v2138
  %v2156 = vadd.f32 %v370, %v2140
  %v2157 = vld [vmem:[%s9] sm:$0x1]
  %v2158 = vlaneseq
  %v2159 = vshrl.u32 %v2158, 7
  %v2160 = vsub.s32 0, %v2159
  %v2161 = vrot.slane %v2157, %v2160
  %2163 = vrot.lane.b32.xlu0 %v2161, 96
  %v2164 = vpop.permute.xlu0 %2163
  %v2166 = vmul.f32 %v2149, %v2164
  %v2167 = vmul.f32 %v2150, %v2164
  %v2168 = vmul.f32 %v2151, %v2164
  %v2169 = vmul.f32 %v2152, %v2164
  %v2170 = vmul.f32 %v2153, %v2164
  %v2171 = vmul.f32 %v2154, %v2164
  %v2172 = vmul.f32 %v2155, %v2164
  %v2173 = vmul.f32 %v2156, %v2164
  %v2174 = vld [vmem:[%s9 + $0x1] sm:$0x1]
  %v2175 = vlaneseq
  %v2176 = vshrl.u32 %v2175, 7
  %v2177 = vsub.s32 0, %v2176
  %v2178 = vrot.slane %v2174, %v2177
  %2180 = vrot.lane.b32.xlu0 %v2178, 96
  %v2181 = vpop.permute.xlu0 %2180
  %v2183 = vadd.f32 %v2166, %v2181
  %v2184 = vadd.f32 %v2167, %v2181
  %v2185 = vadd.f32 %v2168, %v2181
  %v2186 = vadd.f32 %v2169, %v2181
  %v2187 = vadd.f32 %v2170, %v2181
  %v2188 = vadd.f32 %v2171, %v2181
  %v2189 = vadd.f32 %v2172, %v2181
  %v2190 = vadd.f32 %v2173, %v2181
  %v2191 = vmax.f32 %v2183, 0.0
  %v2192 = vmax.f32 %v2184, 0.0
  %v2193 = vmax.f32 %v2185, 0.0
  %v2194 = vmax.f32 %v2186, 0.0
  %v2195 = vmax.f32 %v2187, 0.0
  %v2196 = vmax.f32 %v2188, 0.0
  %v2197 = vmax.f32 %v2189, 0.0
  %v2198 = vmax.f32 %v2190, 0.0
  %v2199 = vld [vmem:[%s10] sm:$0x1]
  %v2200 = vlaneseq
  %v2201 = vshrl.u32 %v2200, 7
  %v2202 = vsub.s32 0, %v2201
  %v2203 = vrot.slane %v2199, %v2202
  %v2204 = vmul.f32 %v1540, %v2203
  %v2205 = vmul.f32 %v1541, %v2203
  %v2206 = vmul.f32 %v1542, %v2203
  %v2207 = vmul.f32 %v1543, %v2203
  %v2208 = vmul.f32 %v1544, %v2203
  %v2209 = vmul.f32 %v1545, %v2203
  %v2210 = vmul.f32 %v1546, %v2203
  %v2211 = vmul.f32 %v1547, %v2203
  %v2212 = vmul.f32 %v1548, %v2203
  %v2213 = vmul.f32 %v1549, %v2203
  %v2214 = vmul.f32 %v1550, %v2203
  %v2215 = vmul.f32 %v1551, %v2203
  %v2216 = vmul.f32 %v1552, %v2203
  %v2217 = vmul.f32 %v1553, %v2203
  %v2218 = vmul.f32 %v1554, %v2203
  %v2219 = vmul.f32 %v1555, %v2203
  %v2220 = vmul.f32 %v1556, %v2203
  %v2221 = vmul.f32 %v1557, %v2203
  %v2222 = vmul.f32 %v1558, %v2203
  %v2223 = vmul.f32 %v1559, %v2203
  %v2224 = vmul.f32 %v1560, %v2203
  %v2225 = vmul.f32 %v1561, %v2203
  %v2226 = vmul.f32 %v1562, %v2203
  %v2227 = vmul.f32 %v1563, %v2203
  %v2228 = vmul.f32 %v1564, %v2203
  %v2229 = vmul.f32 %v1565, %v2203
  %v2230 = vmul.f32 %v1566, %v2203
  %v2231 = vmul.f32 %v1567, %v2203
  %v2232 = vmul.f32 %v1568, %v2203
  %v2233 = vmul.f32 %v1569, %v2203
  %v2234 = vmul.f32 %v1570, %v2203
  %v2235 = vmul.f32 %v1571, %v2203
  %v2236 = vld [vmem:[%s10 + $0x1] sm:$0x1]
  %v2237 = vlaneseq
  %v2238 = vshrl.u32 %v2237, 7
  %v2239 = vsub.s32 0, %v2238
  %v2240 = vrot.slane %v2236, %v2239
  %v2241 = vadd.f32 %v2204, %v2240
  %v2242 = vadd.f32 %v2205, %v2240
  %v2243 = vadd.f32 %v2206, %v2240
  %v2244 = vadd.f32 %v2207, %v2240
  %v2245 = vadd.f32 %v2208, %v2240
  %v2246 = vadd.f32 %v2209, %v2240
  %v2247 = vadd.f32 %v2210, %v2240
  %v2248 = vadd.f32 %v2211, %v2240
  %v2249 = vadd.f32 %v2212, %v2240
  %v2250 = vadd.f32 %v2213, %v2240
  %v2251 = vadd.f32 %v2214, %v2240
  %v2252 = vadd.f32 %v2215, %v2240
  %v2253 = vadd.f32 %v2216, %v2240
  %v2254 = vadd.f32 %v2217, %v2240
  %v2255 = vadd.f32 %v2218, %v2240
  %v2256 = vadd.f32 %v2219, %v2240
  %v2257 = vadd.f32 %v2220, %v2240
  %v2258 = vadd.f32 %v2221, %v2240
  %v2259 = vadd.f32 %v2222, %v2240
  %v2260 = vadd.f32 %v2223, %v2240
  %v2261 = vadd.f32 %v2224, %v2240
  %v2262 = vadd.f32 %v2225, %v2240
  %v2263 = vadd.f32 %v2226, %v2240
  %v2264 = vadd.f32 %v2227, %v2240
  %v2265 = vadd.f32 %v2228, %v2240
  %v2266 = vadd.f32 %v2229, %v2240
  %v2267 = vadd.f32 %v2230, %v2240
  %v2268 = vadd.f32 %v2231, %v2240
  %v2269 = vadd.f32 %v2232, %v2240
  %v2270 = vadd.f32 %v2233, %v2240
  %v2271 = vadd.f32 %v2234, %v2240
  %v2272 = vadd.f32 %v2235, %v2240
  %v2273 = vmax.f32 %v2241, 0.0
  %v2274 = vmax.f32 %v2242, 0.0
  %v2275 = vmax.f32 %v2243, 0.0
  %v2276 = vmax.f32 %v2244, 0.0
  %v2277 = vmax.f32 %v2245, 0.0
  %v2278 = vmax.f32 %v2246, 0.0
  %v2279 = vmax.f32 %v2247, 0.0
  %v2280 = vmax.f32 %v2248, 0.0
  %v2281 = vmax.f32 %v2249, 0.0
  %v2282 = vmax.f32 %v2250, 0.0
  %v2283 = vmax.f32 %v2251, 0.0
  %v2284 = vmax.f32 %v2252, 0.0
  %v2285 = vmax.f32 %v2253, 0.0
  %v2286 = vmax.f32 %v2254, 0.0
  %v2287 = vmax.f32 %v2255, 0.0
  %v2288 = vmax.f32 %v2256, 0.0
  %v2289 = vmax.f32 %v2257, 0.0
  %v2290 = vmax.f32 %v2258, 0.0
  %v2291 = vmax.f32 %v2259, 0.0
  %v2292 = vmax.f32 %v2260, 0.0
  %v2293 = vmax.f32 %v2261, 0.0
  %v2294 = vmax.f32 %v2262, 0.0
  %v2295 = vmax.f32 %v2263, 0.0
  %v2296 = vmax.f32 %v2264, 0.0
  %v2297 = vmax.f32 %v2265, 0.0
  %v2298 = vmax.f32 %v2266, 0.0
  %v2299 = vmax.f32 %v2267, 0.0
  %v2300 = vmax.f32 %v2268, 0.0
  %v2301 = vmax.f32 %v2269, 0.0
  %v2302 = vmax.f32 %v2270, 0.0
  %v2303 = vmax.f32 %v2271, 0.0
  %v2304 = vmax.f32 %v2272, 0.0
  %2313 = vrot.lane.b32.xlu0 %v2191, 32
  %v2314 = vpop.permute.xlu0 %2313
  %2315 = vrot.lane.b32.xlu0 %v2192, 32
  %v2316 = vpop.permute.xlu0 %2315
  %2317 = vrot.lane.b32.xlu0 %v2193, 32
  %v2318 = vpop.permute.xlu0 %2317
  %2319 = vrot.lane.b32.xlu0 %v2194, 32
  %v2320 = vpop.permute.xlu0 %2319
  %2321 = vrot.lane.b32.xlu0 %v2195, 32
  %v2322 = vpop.permute.xlu0 %2321
  %2323 = vrot.lane.b32.xlu0 %v2196, 32
  %v2324 = vpop.permute.xlu0 %2323
  %2325 = vrot.lane.b32.xlu0 %v2197, 32
  %v2326 = vpop.permute.xlu0 %2325
  %2327 = vrot.lane.b32.xlu0 %v2198, 32
  %v2328 = vpop.permute.xlu0 %2327
  %v2337 = vadd.f32 %v40, %v2314
  %v2338 = vadd.f32 %v41, %v2316
  %v2339 = vadd.f32 %v42, %v2318
  %v2340 = vadd.f32 %v43, %v2320
  %v2341 = vadd.f32 %v44, %v2322
  %v2342 = vadd.f32 %v45, %v2324
  %v2343 = vadd.f32 %v46, %v2326
  %v2344 = vadd.f32 %v47, %v2328
  %2345 = vst.msk [vmem:[%s11] sm:$0xff] %vm243, %v2337
  %2346 = vst.msk [vmem:[%s11 + $0x8] sm:$0xff] %vm243, %v2338
  %2347 = vst.msk [vmem:[%s11 + $0x10] sm:$0xff] %vm243, %v2339
  %2348 = vst.msk [vmem:[%s11 + $0x18] sm:$0xff] %vm243, %v2340
  %2349 = vst.msk [vmem:[%s11 + $0x20] sm:$0xff] %vm243, %v2341
  %2350 = vst.msk [vmem:[%s11 + $0x28] sm:$0xff] %vm243, %v2342
  %2351 = vst.msk [vmem:[%s11 + $0x30] sm:$0xff] %vm243, %v2343
  %2352 = vst.msk [vmem:[%s11 + $0x38] sm:$0xff] %vm243, %v2344
  %v2353 = vadd.f32 %v48, %v2273
  %v2354 = vadd.f32 %v49, %v2274
  %v2355 = vadd.f32 %v50, %v2275
  %v2356 = vadd.f32 %v51, %v2276
  %v2357 = vadd.f32 %v52, %v2277
  %v2358 = vadd.f32 %v53, %v2278
  %v2359 = vadd.f32 %v54, %v2279
  %v2360 = vadd.f32 %v55, %v2280
  %v2361 = vadd.f32 %v56, %v2281
  %v2362 = vadd.f32 %v57, %v2282
  %v2363 = vadd.f32 %v58, %v2283
  %v2364 = vadd.f32 %v59, %v2284
  %v2365 = vadd.f32 %v60, %v2285
  %v2366 = vadd.f32 %v61, %v2286
  %v2367 = vadd.f32 %v62, %v2287
  %v2368 = vadd.f32 %v63, %v2288
  %v2369 = vadd.f32 %v64, %v2289
  %v2370 = vadd.f32 %v65, %v2290
  %v2371 = vadd.f32 %v66, %v2291
  %v2372 = vadd.f32 %v67, %v2292
  %v2373 = vadd.f32 %v68, %v2293
  %v2374 = vadd.f32 %v69, %v2294
  %v2375 = vadd.f32 %v70, %v2295
  %v2376 = vadd.f32 %v71, %v2296
  %v2377 = vadd.f32 %v72, %v2297
  %v2378 = vadd.f32 %v73, %v2298
  %v2379 = vadd.f32 %v74, %v2299
  %v2380 = vadd.f32 %v75, %v2300
  %v2381 = vadd.f32 %v76, %v2301
  %v2382 = vadd.f32 %v77, %v2302
  %v2383 = vadd.f32 %v78, %v2303
  %v2384 = vadd.f32 %v79, %v2304
  %2385 = vst.msk [vmem:[%s12] sm:$0xff] %vm243, %v2353
  %2386 = vst.msk [vmem:[%s12 + $0x8] sm:$0xff] %vm243, %v2354
  %2387 = vst.msk [vmem:[%s12 + $0x10] sm:$0xff] %vm243, %v2355
  %2388 = vst.msk [vmem:[%s12 + $0x18] sm:$0xff] %vm243, %v2356
  %2389 = vst.msk [vmem:[%s12 + $0x20] sm:$0xff] %vm243, %v2357
  %2390 = vst.msk [vmem:[%s12 + $0x28] sm:$0xff] %vm243, %v2358
  %2391 = vst.msk [vmem:[%s12 + $0x30] sm:$0xff] %vm243, %v2359
  %2392 = vst.msk [vmem:[%s12 + $0x38] sm:$0xff] %vm243, %v2360
  %2393 = vst.msk [vmem:[%s12 + $0x40] sm:$0xff] %vm243, %v2361
  %2394 = vst.msk [vmem:[%s12 + $0x48] sm:$0xff] %vm243, %v2362
  %2395 = vst.msk [vmem:[%s12 + $0x50] sm:$0xff] %vm243, %v2363
  %2396 = vst.msk [vmem:[%s12 + $0x58] sm:$0xff] %vm243, %v2364
  %2397 = vst.msk [vmem:[%s12 + $0x60] sm:$0xff] %vm243, %v2365
  %2398 = vst.msk [vmem:[%s12 + $0x68] sm:$0xff] %vm243, %v2366
  %2399 = vst.msk [vmem:[%s12 + $0x70] sm:$0xff] %vm243, %v2367
  %2400 = vst.msk [vmem:[%s12 + $0x78] sm:$0xff] %vm243, %v2368
  %2401 = vst.msk [vmem:[%s12 + $0x80] sm:$0xff] %vm243, %v2369
  %2402 = vst.msk [vmem:[%s12 + $0x88] sm:$0xff] %vm243, %v2370
  %2403 = vst.msk [vmem:[%s12 + $0x90] sm:$0xff] %vm243, %v2371
  %2404 = vst.msk [vmem:[%s12 + $0x98] sm:$0xff] %vm243, %v2372
  %2405 = vst.msk [vmem:[%s12 + $0xa0] sm:$0xff] %vm243, %v2373
  %2406 = vst.msk [vmem:[%s12 + $0xa8] sm:$0xff] %vm243, %v2374
  %2407 = vst.msk [vmem:[%s12 + $0xb0] sm:$0xff] %vm243, %v2375
  %2408 = vst.msk [vmem:[%s12 + $0xb8] sm:$0xff] %vm243, %v2376
  %2409 = vst.msk [vmem:[%s12 + $0xc0] sm:$0xff] %vm243, %v2377
  %2410 = vst.msk [vmem:[%s12 + $0xc8] sm:$0xff] %vm243, %v2378
  %2411 = vst.msk [vmem:[%s12 + $0xd0] sm:$0xff] %vm243, %v2379
  %2412 = vst.msk [vmem:[%s12 + $0xd8] sm:$0xff] %vm243, %v2380
  %2413 = vst.msk [vmem:[%s12 + $0xe0] sm:$0xff] %vm243, %v2381
  %2414 = vst.msk [vmem:[%s12 + $0xe8] sm:$0xff] %vm243, %v2382
  %2415 = vst.msk [vmem:[%s12 + $0xf0] sm:$0xff] %vm243, %v2383
  %2416 = vst.msk [vmem:[%s12 + $0xf8] sm:$0xff] %vm243, %v2384
  // Predicated region
  $region46: #{tpu_custom_call.1} parent=0 // pred_check
    _
  $region47: #{tpu_custom_call.1} parent=0 // pred_check_branch
    %2418 = sbr.rel (0) target = $region49
  $region48: #{tpu_custom_call.1} parent=0 // pred_region
    _
  $region49: #{tpu_custom_call.1} parent=0 // pred_fallthru
    _
  // Predicated region
  $region50: #{tpu_custom_call.1} parent=0 // pred_check
    _
  $region51: #{tpu_custom_call.1} parent=0 // pred_check_branch
    %2420 = sbr.rel (0) target = $region53
  $region52: #{tpu_custom_call.1} parent=0 // pred_region
    _
  $region53: #{tpu_custom_call.1} parent=0 // pred_fallthru
    _
  // Predicated region
  $region54: #{tpu_custom_call.1} parent=0 // pred_check
    _
  $region55: #{tpu_custom_call.1} parent=0 // pred_check_branch
    %2422 = sbr.rel (0) target = $region57
  $region56: #{tpu_custom_call.1} parent=0 // pred_region
    _
  $region57: #{tpu_custom_call.1} parent=0 // pred_fallthru
    _
  // Predicated region
  $region58: #{tpu_custom_call.1} parent=0 // pred_check
    _
  $region59: #{tpu_custom_call.1} parent=0 // pred_check_branch
    %2424 = sbr.rel (0) target = $region61
  $region60: #{tpu_custom_call.1} parent=0 // pred_region
    _
  $region61: #{tpu_custom_call.1} parent=0 // pred_fallthru
    _

</llo_original>
